<compile_context>
chip_gen: v5e
topology: v5e:2x2
jax: 0.10.0
libtpu: 0.0.40
codegen_flags: <defaults>
</compile_context>

<pallas_src>
import jax
import jax.numpy as jnp
from jax.experimental import pallas as pl
from jax.experimental.pallas import tpu as pltpu


def _pick_hw_tile(hw, requested=None):
    """Largest lane-dense tile (<=2048) that divides HW; fall back to full HW."""
    if requested is not None:
        if hw % requested != 0:
            raise ValueError(f"tile_hw={requested} must divide HW={hw}")
        return requested
    for cand in (2048, 1024, 512, 256, 128):
        if hw % cand == 0:
            return cand
    return hw


def _split_filter_project_weights(Wf, bf, C, K):
    """Pre-rearrange grouped filter_project weights to emit torch.split's flat
    (weight, bias) layout directly.

    PyTorch flattens the grouped-conv output (length K*(C+1), group-major) and
    splits it into the first K*C entries (dynamic weight) and last K entries
    (dynamic bias).  Flat index i maps to f[i//(C+1), i%(C+1)] with
    f[k] = Wf[k] @ cf[k] + bf[k].  A weight row m (flat indices m*C..m*C+C-1)
    touches at most two source classes: lo = (m*C)//(C+1) and lo+1.  We build
    masked weights for the 'lo'/'hi' source class plus one-hot matrices that
    gather the matching cf rows inside the kernel with tiny (K,K)@(K,C) matmuls
    -> no in-kernel reshape/gather.
    """
    m_idx = jnp.arange(K)[:, None]
    c_idx = jnp.arange(C)[None, :]
    flat_w = m_idx * C + c_idx                                  # (K, C)
    k0 = flat_w // (C + 1)
    j0 = flat_w % (C + 1)
    Wsplit = Wf[k0, j0, :]                                      # (K, C, C)
    bsplit = bf[k0, j0]                                         # (K, C)
    lo = (m_idx[:, 0] * C) // (C + 1)                           # (K,)
    mask_lo = (k0 == lo[:, None]).astype(jnp.float32)[:, :, None]
    Wlo = Wsplit * mask_lo
    Whi = Wsplit * (1.0 - mask_lo)
    sel_lo = jax.nn.one_hot(lo, K, dtype=jnp.float32)                       # (K, K)
    sel_hi = jax.nn.one_hot(jnp.minimum(lo + 1, K - 1), K, dtype=jnp.float32)

    flat_b = K * C + jnp.arange(K)                              # bias flat indices
    k1 = flat_b // (C + 1)
    j1 = flat_b % (C + 1)
    Wb = Wf[k1, j1, :]                                          # (K, C)
    bb = bf[k1, j1].reshape(K, 1)                               # (K, 1)
    sel_b = jax.nn.one_hot(k1, K, dtype=jnp.float32)            # (K, K)
    return Wlo, Whi, bsplit, sel_lo, sel_hi, Wb, bb, sel_b


def cond_head_forward(feat_nchw, params, tile_hw=None):
    Wc = params["Wc"]          # (C, Cin)
    scale = params["scale"]    # (C, 1)   folded BN scale
    shift = params["shift"]    # (C, 1)   folded BN shift
    Wg = params["Wg"]          # (K, C)
    bg = params["bg"]          # (K, 1)
    Wf = params["Wf"]          # (K, C+1, C)
    bf = params["bf"]          # (K, C+1)

    B, Cin, H, W = feat_nchw.shape
    HW = H * W
    C = Wc.shape[0]
    K = Wg.shape[0]
    tile = _pick_hw_tile(HW, tile_hw)
    T = HW // tile
    inv_hw = 1.0 / float(HW)

    # feat is the dominant HBM stream: keep it bf16 (MXU bf16 x bf16 -> f32 acc).
    feat = feat_nchw.reshape(B, Cin, HW).astype(jnp.bfloat16)
    Wc_bf = Wc.astype(jnp.bfloat16)

    (Wlo, Whi, bsplit, sel_lo, sel_hi, Wb, bb, sel_b) = \
        _split_filter_project_weights(Wf, bf, C, K)

    def kernel(feat_ref, wc_ref, scale_ref, shift_ref, wg_ref, bg_ref,
               wlo_ref, whi_ref, bsp_ref, sel_lo_ref, sel_hi_ref, sel_b_ref,
               wb_ref, bb_ref, seg_ref, x_keep, cf_acc):
        t = pl.program_id(1)

        @pl.when(t == 0)
        def _():
            cf_acc[...] = jnp.zeros_like(cf_acc)

        # 1x1 conv (bias=False, MXU, bf16 inputs) + folded BatchNorm2d + ReLU.
        x = jnp.dot(wc_ref[...], feat_ref[0],
                    preferred_element_type=jnp.float32)
        x = jnp.maximum(scale_ref[...] * x + shift_ref[...], 0.0)    # (C, tile)

        # Keep x resident in VMEM for the dynamic conv (no HBM round trip).
        off = pl.multiple_of(t * tile, tile)
        x_keep[:, pl.ds(off, tile)] = x

        # guidance_project + softmax over classes (EUP reciprocal).
        g = jnp.dot(wg_ref[...], x, preferred_element_type=jnp.float32)
        g = g + bg_ref[...]
        g = g - jnp.max(g, axis=0, keepdims=True)
        e = jnp.exp(g)
        gm = e * pl.reciprocal(jnp.sum(e, axis=0, keepdims=True), approx=True)

        # cond_filters accumulator: cf += softmax(g) @ x^T   (1/HW folded below)
        cf_acc[...] += jax.lax.dot_general(
            gm, x, (((1,), (1,)), ((), ())),
            preferred_element_type=jnp.float32)

        @pl.when(t == pl.num_programs(1) - 1)
        def _():
            cf = cf_acc[...] * inv_hw                                # (K, C)
            # grouped filter_project, rearranged in the wrapper so this emits
            # torch.split's flat (weight, bias) layout directly.
            cf_lo = jnp.dot(sel_lo_ref[...], cf, preferred_element_type=jnp.float32)
            cf_hi = jnp.dot(sel_hi_ref[...], cf, preferred_element_type=jnp.float32)
            cf_b = jnp.dot(sel_b_ref[...], cf, preferred_element_type=jnp.float32)
            wdyn = (jnp.sum(wlo_ref[...] * cf_lo[:, None, :], axis=-1)
                    + jnp.sum(whi_ref[...] * cf_hi[:, None, :], axis=-1)
                    + bsp_ref[...])                                  # (K, C)
            bdyn = (jnp.sum(wb_ref[...] * cf_b, axis=-1, keepdims=True)
                    + bb_ref[...])                                   # (K, 1)
            # dynamic per-sample 1x1 conv on the full VMEM-resident x.
            seg = jnp.dot(wdyn, x_keep[...],
                          preferred_element_type=jnp.float32)
            seg_ref[0] = seg + bdyn

    const2 = lambda b, t: (0, 0)
    const3 = lambda b, t: (0, 0, 0)

    weight_bytes = sum(int(a.size) * a.dtype.itemsize for a in
                       (Wc_bf, scale, shift, Wg, bg, Wlo, Whi, bsplit,
                        sel_lo, sel_hi, sel_b, Wb, bb))
    est = (2 * Cin * tile * 2           # double-buffered bf16 feat tiles
           + C * HW * 4                 # x scratch
           + K * C * 4                  # cf accumulator
           + 2 * K * HW * 4             # seg output buffers
           + 2 * weight_bytes)
    vmem_limit = int(min(max(2 * est, 32 * 2 ** 20), 64 * 2 ** 20))

    seg = pl.pallas_call(
        kernel,
        out_shape=jax.ShapeDtypeStruct((B, K, HW), jnp.float32),
        grid_spec=pltpu.PrefetchScalarGridSpec(
            num_scalar_prefetch=0,
            grid=(B, T),
            in_specs=[
                pl.BlockSpec((1, Cin, tile), lambda b, t: (b, 0, t)),
                pl.BlockSpec((C, Cin), const2),
                pl.BlockSpec((C, 1), const2),
                pl.BlockSpec((C, 1), const2),
                pl.BlockSpec((K, C), const2),
                pl.BlockSpec((K, 1), const2),
                pl.BlockSpec((K, C, C), const3),
                pl.BlockSpec((K, C, C), const3),
                pl.BlockSpec((K, C), const2),
                pl.BlockSpec((K, K), const2),
                pl.BlockSpec((K, K), const2),
                pl.BlockSpec((K, K), const2),
                pl.BlockSpec((K, C), const2),
                pl.BlockSpec((K, 1), const2),
            ],
            out_specs=pl.BlockSpec((1, K, HW), lambda b, t: (b, 0, 0)),
            scratch_shapes=[
                pltpu.VMEM((C, HW), jnp.float32),   # x, resident per sample
                pltpu.VMEM((K, C), jnp.float32),    # cond_filters accumulator
            ],
        ),
        compiler_params=pltpu.CompilerParams(
            dimension_semantics=("parallel", "arbitrary"),
            vmem_limit_bytes=vmem_limit),
    )(feat, Wc_bf, scale, shift, Wg, bg,
      Wlo, Whi, bsplit, sel_lo, sel_hi, sel_b, Wb, bb)

    return seg.reshape(B, K, H, W)


def cond_head_reference(feat_nchw, params):
    """Pure-JAX reference mirroring the PyTorch forward (conv inputs rounded to
    bf16 to match the kernel's bf16 feat streaming)."""
    Wc = params["Wc"].astype(jnp.bfloat16).astype(jnp.float32)
    scale, shift = params["scale"][:, 0], params["shift"][:, 0]
    Wg, bg = params["Wg"], params["bg"][:, 0]
    Wf, bf = params["Wf"], params["bf"]
    B, Cin, H, W = feat_nchw.shape
    C = Wc.shape[0]
    K = Wg.shape[0]
    HW = H * W
    feat = feat_nchw.astype(jnp.bfloat16).astype(jnp.float32)

    x = jnp.einsum('co,bohw->bchw', Wc, feat)
    x = jnp.maximum(scale[None, :, None, None] * x + shift[None, :, None, None], 0.0)
    g = jnp.einsum('kc,bchw->bkhw', Wg, x) + bg[None, :, None, None]
    gm = jax.nn.softmax(g, axis=1).reshape(B, K, HW)
    key = x.reshape(B, C, HW)
    cf = jnp.einsum('bkp,bcp->bkc', gm, key) / HW
    f = jnp.einsum('kjc,bkc->bkj', Wf, cf) + bf[None]                    # (B, K, C+1)
    f_flat = f.reshape(B, K * (C + 1))
    wdyn = f_flat[:, :K * C].reshape(B, K, C)
    bdyn = f_flat[:, K * C:]
    seg = jnp.einsum('bkc,bcp->bkp', wdyn, key) + bdyn[:, :, None]
    return seg.reshape(B, K, H, W)


def make_params(key, in_channel, channel, num_classes):
    Cin, C, K = in_channel, channel, num_classes
    ks = jax.random.split(key, 9)
    Wc = 0.1 * jax.random.normal(ks[0], (C, Cin), jnp.float32)
    gamma = 1.0 + 0.1 * jax.random.normal(ks[1], (C,), jnp.float32)
    beta = 0.1 * jax.random.normal(ks[2], (C,), jnp.float32)
    mean = 0.1 * jax.random.normal(ks[3], (C,), jnp.float32)
    var = jnp.abs(jax.random.normal(ks[4], (C,), jnp.float32)) + 0.5
    eps = 1e-5
    inv_std = 1.0 / jnp.sqrt(var + eps)
    scale = (gamma * inv_std).reshape(C, 1)
    shift = (beta - gamma * mean * inv_std).reshape(C, 1)
    Wg = 0.1 * jax.random.normal(ks[5], (K, C), jnp.float32)
    bg = 0.1 * jax.random.normal(ks[6], (K, 1), jnp.float32)
    Wf = 0.1 * jax.random.normal(ks[7], (K, C + 1, C), jnp.float32)
    bf = 0.1 * jax.random.normal(ks[8], (K, C + 1), jnp.float32)
    return dict(Wc=Wc, scale=scale, shift=shift, Wg=Wg, bg=bg, Wf=Wf, bf=bf)


if __name__ == "__main__":
    B, in_channel, channel, num_classes = 2, 32, 16, 5
    H = W = 16

    root = jax.random.PRNGKey(0)
    pkey, xkey = jax.random.split(root)
    params = make_params(pkey, in_channel, channel, num_classes)
    feat = jax.random.normal(xkey, (B, in_channel, H, W), jnp.float32)

    # tile_hw=128 -> 2 HW tiles per sample, exercising the cf accumulator path.
    seg = cond_head_forward(feat, params, tile_hw=128)
    seg = jax.block_until_ready(seg)
    assert seg.shape == (B, num_classes, H, W)

    ref = cond_head_reference(feat, params)
    err = float(jnp.max(jnp.abs(seg - ref)))
    assert err < 5e-3, f"max abs error too large: {err}"

    print("KERNEL_OK")
</pallas_src>

<mosaic_0001>
module attributes {stable_mosaic.version = 11 : i64} {
  func.func @kernel(%arg0: i32, %arg1: i32, %arg2: memref<1x32x128xbf16, #tpu.memory_space<vmem>>, %arg3: memref<16x32xbf16, #tpu.memory_space<vmem>>, %arg4: memref<16x1xf32, #tpu.memory_space<vmem>>, %arg5: memref<16x1xf32, #tpu.memory_space<vmem>>, %arg6: memref<5x16xf32, #tpu.memory_space<vmem>>, %arg7: memref<5x1xf32, #tpu.memory_space<vmem>>, %arg8: memref<5x16x16xf32, #tpu.memory_space<vmem>>, %arg9: memref<5x16x16xf32, #tpu.memory_space<vmem>>, %arg10: memref<5x16xf32, #tpu.memory_space<vmem>>, %arg11: memref<5x5xf32, #tpu.memory_space<vmem>>, %arg12: memref<5x5xf32, #tpu.memory_space<vmem>>, %arg13: memref<5x5xf32, #tpu.memory_space<vmem>>, %arg14: memref<5x16xf32, #tpu.memory_space<vmem>>, %arg15: memref<5x1xf32, #tpu.memory_space<vmem>>, %arg16: memref<1x5x256xf32, #tpu.memory_space<vmem>>, %arg17: memref<16x256xf32, #tpu.memory_space<vmem>>, %arg18: memref<5x16xf32, #tpu.memory_space<vmem>>) attributes {dimension_semantics = [#tpu.dimension_semantics<parallel>, #tpu.dimension_semantics<arbitrary>], iteration_bounds = array<i64: 2, 2>, scalar_prefetch = 0 : i64, scratch_operands = 2 : i64, tpu.core_type = #tpu.core_type<tc>, window_params = [{transform_indices = @transform_0, window_bounds = array<i64: 1, 32, 128>}, {pipeline_mode = #tpu.pipeline_mode<synchronous>, transform_indices = @transform_1, window_bounds = array<i64: 16, 32>}, {pipeline_mode = #tpu.pipeline_mode<synchronous>, transform_indices = @transform_2, window_bounds = array<i64: 16, 1>}, {pipeline_mode = #tpu.pipeline_mode<synchronous>, transform_indices = @transform_3, window_bounds = array<i64: 16, 1>}, {pipeline_mode = #tpu.pipeline_mode<synchronous>, transform_indices = @transform_4, window_bounds = array<i64: 5, 16>}, {pipeline_mode = #tpu.pipeline_mode<synchronous>, transform_indices = @transform_5, window_bounds = array<i64: 5, 1>}, {pipeline_mode = #tpu.pipeline_mode<synchronous>, transform_indices = @transform_6, window_bounds = array<i64: 5, 16, 16>}, {pipeline_mode = #tpu.pipeline_mode<synchronous>, transform_indices = @transform_7, window_bounds = array<i64: 5, 16, 16>}, {pipeline_mode = #tpu.pipeline_mode<synchronous>, transform_indices = @transform_8, window_bounds = array<i64: 5, 16>}, {pipeline_mode = #tpu.pipeline_mode<synchronous>, transform_indices = @transform_9, window_bounds = array<i64: 5, 5>}, {pipeline_mode = #tpu.pipeline_mode<synchronous>, transform_indices = @transform_10, window_bounds = array<i64: 5, 5>}, {pipeline_mode = #tpu.pipeline_mode<synchronous>, transform_indices = @transform_11, window_bounds = array<i64: 5, 5>}, {pipeline_mode = #tpu.pipeline_mode<synchronous>, transform_indices = @transform_12, window_bounds = array<i64: 5, 16>}, {pipeline_mode = #tpu.pipeline_mode<synchronous>, transform_indices = @transform_13, window_bounds = array<i64: 5, 1>}, {transform_indices = @transform_14, window_bounds = array<i64: 1, 5, 256>}]} {
    %c0_i32 = arith.constant 0 : i32
    %0 = arith.cmpi eq, %arg1, %c0_i32 : i32
    %1 = arith.extui %0 : i1 to i32
    %c0_i32_0 = arith.constant 0 : i32
    %2 = arith.cmpi ne, %1, %c0_i32_0 : i32
    scf.if %2 {
      %cst_24 = arith.constant 0.000000e+00 : f32
      %41 = vector.broadcast %cst_24 : f32 to vector<5x16xf32>
      %c0_25 = arith.constant 0 : index
      %c0_26 = arith.constant 0 : index
      %42 = vector.load %arg18[%c0_25, %c0_26] : memref<5x16xf32, #tpu.memory_space<vmem>>, vector<5x16xf32>
      tpu.vector_store %arg18[%c0_25, %c0_26], %41 {strides = array<i32>} : memref<5x16xf32, #tpu.memory_space<vmem>>, vector<5x16xf32>,
    } else {
    }
    %c0 = arith.constant 0 : index
    %c0_1 = arith.constant 0 : index
    %3 = vector.load %arg3[%c0, %c0_1] : memref<16x32xbf16, #tpu.memory_space<vmem>>, vector<16x32xbf16>
    %c0_2 = arith.constant 0 : index
    %c0_3 = arith.constant 0 : index
    %c0_4 = arith.constant 0 : index
    %4 = vector.load %arg2[%c0_2, %c0_3, %c0_4] : memref<1x32x128xbf16, #tpu.memory_space<vmem>>, vector<1x32x128xbf16>
    %5 = vector.shape_cast %4 : vector<1x32x128xbf16> to vector<32x128xbf16>
    %cst = arith.constant dense<0.000000e+00> : vector<16x128xf32>
    %6 = tpu.matmul %3, %5, %cst {dimension_numbers = #tpu.dot_dimension_numbers<[1], [0], [0], [1], [0, 0, 1, 1], [], []>} : vector<16x32xbf16>, vector<32x128xbf16>, vector<16x128xf32> -> vector<16x128xf32>
    %c0_5 = arith.constant 0 : index
    %c0_6 = arith.constant 0 : index
    %7 = vector.load %arg4[%c0_5, %c0_6] : memref<16x1xf32, #tpu.memory_space<vmem>>, vector<16x1xf32>
    %8 = vector.broadcast %7 : vector<16x1xf32> to vector<16x128xf32>
    %9 = arith.mulf %8, %6 : vector<16x128xf32>
    %c0_7 = arith.constant 0 : index
    %c0_8 = arith.constant 0 : index
    %10 = vector.load %arg5[%c0_7, %c0_8] : memref<16x1xf32, #tpu.memory_space<vmem>>, vector<16x1xf32>
    %11 = vector.broadcast %10 : vector<16x1xf32> to vector<16x128xf32>
    %12 = arith.addf %9, %11 : vector<16x128xf32>
    %cst_9 = arith.constant 0.000000e+00 : f32
    %13 = vector.broadcast %cst_9 : f32 to vector<16x128xf32>
    %14 = arith.maximumf %12, %13 : vector<16x128xf32>
    %c128_i32 = arith.constant 128 : i32
    %15 = arith.muli %arg1, %c128_i32 : i32
    %16 = tpu.assume_multiple %15, 128 : i32
    %c0_10 = arith.constant 0 : index
    %17 = arith.index_cast %16 : i32 to index
    %18 = vector.load %arg17[%c0_10, %17] : memref<16x256xf32, #tpu.memory_space<vmem>>, vector<16x128xf32>
    tpu.vector_store %arg17[%c0_10, %17], %14 {strides = array<i32>} : memref<16x256xf32, #tpu.memory_space<vmem>>, vector<16x128xf32>,
    %c0_11 = arith.constant 0 : index
    %c0_12 = arith.constant 0 : index
    %19 = vector.load %arg6[%c0_11, %c0_12] : memref<5x16xf32, #tpu.memory_space<vmem>>, vector<5x16xf32>
    %cst_13 = arith.constant dense<0.000000e+00> : vector<5x128xf32>
    %20 = tpu.matmul %19, %14, %cst_13 {dimension_numbers = #tpu.dot_dimension_numbers<[1], [0], [0], [1], [0, 0, 1, 1], [], []>} : vector<5x16xf32>, vector<16x128xf32>, vector<5x128xf32> -> vector<5x128xf32>
    %c0_14 = arith.constant 0 : index
    %c0_15 = arith.constant 0 : index
    %21 = vector.load %arg7[%c0_14, %c0_15] : memref<5x1xf32, #tpu.memory_space<vmem>>, vector<5x1xf32>
    %22 = vector.broadcast %21 : vector<5x1xf32> to vector<5x128xf32>
    %23 = arith.addf %20, %22 : vector<5x128xf32>
    %cst_16 = arith.constant dense<0xFF800000> : vector<128xf32>
    %24 = vector.multi_reduction <maximumf>, %23, %cst_16 [0] : vector<5x128xf32> to vector<128xf32>
    %25 = vector.shape_cast %24 : vector<128xf32> to vector<1x128xf32>
    %26 = vector.broadcast %25 : vector<1x128xf32> to vector<5x128xf32>
    %27 = arith.subf %23, %26 : vector<5x128xf32>
    %28 = math.exp %27 : vector<5x128xf32>
    %cst_17 = arith.constant dense<0.000000e+00> : vector<128xf32>
    %29 = vector.multi_reduction <add>, %28, %cst_17 [0] : vector<5x128xf32> to vector<128xf32>
    %30 = vector.shape_cast %29 : vector<128xf32> to vector<1x128xf32>
    %31 = tpu.reciprocal %30 {approx = true} : vector<1x128xf32> -> vector<1x128xf32>
    %32 = vector.broadcast %31 : vector<1x128xf32> to vector<5x128xf32>
    %33 = arith.mulf %28, %32 : vector<5x128xf32>
    %c0_18 = arith.constant 0 : index
    %c0_19 = arith.constant 0 : index
    %34 = vector.load %arg18[%c0_18, %c0_19] : memref<5x16xf32, #tpu.memory_space<vmem>>, vector<5x16xf32>
    %cst_20 = arith.constant dense<0.000000e+00> : vector<5x16xf32>
    %35 = tpu.matmul %33, %14, %cst_20 {dimension_numbers = #tpu.dot_dimension_numbers<[1], [1], [0], [0], [0, 0, 1, 0], [], []>} : vector<5x128xf32>, vector<16x128xf32>, vector<5x16xf32> -> vector<5x16xf32>
    %36 = arith.addf %34, %35 : vector<5x16xf32>
    %c0_21 = arith.constant 0 : index
    %c0_22 = arith.constant 0 : index
    %37 = vector.load %arg18[%c0_21, %c0_22] : memref<5x16xf32, #tpu.memory_space<vmem>>, vector<5x16xf32>
    tpu.vector_store %arg18[%c0_21, %c0_22], %36 {strides = array<i32>} : memref<5x16xf32, #tpu.memory_space<vmem>>, vector<5x16xf32>,
    %c1_i32 = arith.constant 1 : i32
    %38 = arith.cmpi eq, %arg1, %c1_i32 : i32
    %39 = arith.extui %38 : i1 to i32
    %c0_i32_23 = arith.constant 0 : i32
    %40 = arith.cmpi ne, %39, %c0_i32_23 : i32
    scf.if %40 {
      %c0_24 = arith.constant 0 : index
      %c0_25 = arith.constant 0 : index
      %41 = vector.load %arg18[%c0_24, %c0_25] : memref<5x16xf32, #tpu.memory_space<vmem>>, vector<5x16xf32>
      %cst_26 = arith.constant 3.906250e-03 : f32
      %42 = vector.broadcast %cst_26 : f32 to vector<5x16xf32>
      %43 = arith.mulf %41, %42 : vector<5x16xf32>
      %c0_27 = arith.constant 0 : index
      %c0_28 = arith.constant 0 : index
      %44 = vector.load %arg11[%c0_27, %c0_28] : memref<5x5xf32, #tpu.memory_space<vmem>>, vector<5x5xf32>
      %cst_29 = arith.constant dense<0.000000e+00> : vector<5x16xf32>
      %45 = tpu.matmul %44, %43, %cst_29 {dimension_numbers = #tpu.dot_dimension_numbers<[1], [0], [0], [1], [0, 0, 1, 1], [], []>} : vector<5x5xf32>, vector<5x16xf32>, vector<5x16xf32> -> vector<5x16xf32>
      %c0_30 = arith.constant 0 : index
      %c0_31 = arith.constant 0 : index
      %46 = vector.load %arg12[%c0_30, %c0_31] : memref<5x5xf32, #tpu.memory_space<vmem>>, vector<5x5xf32>
      %cst_32 = arith.constant dense<0.000000e+00> : vector<5x16xf32>
      %47 = tpu.matmul %46, %43, %cst_32 {dimension_numbers = #tpu.dot_dimension_numbers<[1], [0], [0], [1], [0, 0, 1, 1], [], []>} : vector<5x5xf32>, vector<5x16xf32>, vector<5x16xf32> -> vector<5x16xf32>
      %c0_33 = arith.constant 0 : index
      %c0_34 = arith.constant 0 : index
      %48 = vector.load %arg13[%c0_33, %c0_34] : memref<5x5xf32, #tpu.memory_space<vmem>>, vector<5x5xf32>
      %cst_35 = arith.constant dense<0.000000e+00> : vector<5x16xf32>
      %49 = tpu.matmul %48, %43, %cst_35 {dimension_numbers = #tpu.dot_dimension_numbers<[1], [0], [0], [1], [0, 0, 1, 1], [], []>} : vector<5x5xf32>, vector<5x16xf32>, vector<5x16xf32> -> vector<5x16xf32>
      %c0_36 = arith.constant 0 : index
      %c0_37 = arith.constant 0 : index
      %c0_38 = arith.constant 0 : index
      %50 = vector.load %arg8[%c0_36, %c0_37, %c0_38] : memref<5x16x16xf32, #tpu.memory_space<vmem>>, vector<5x16x16xf32>
      %51 = vector.shape_cast %45 : vector<5x16xf32> to vector<5x1x16xf32>
      %52 = vector.broadcast %51 : vector<5x1x16xf32> to vector<5x16x16xf32>
      %53 = arith.mulf %50, %52 : vector<5x16x16xf32>
      %cst_39 = arith.constant dense<0.000000e+00> : vector<5x16xf32>
      %54 = vector.multi_reduction <add>, %53, %cst_39 [2] : vector<5x16x16xf32> to vector<5x16xf32>
      %c0_40 = arith.constant 0 : index
      %c0_41 = arith.constant 0 : index
      %c0_42 = arith.constant 0 : index
      %55 = vector.load %arg9[%c0_40, %c0_41, %c0_42] : memref<5x16x16xf32, #tpu.memory_space<vmem>>, vector<5x16x16xf32>
      %56 = vector.shape_cast %47 : vector<5x16xf32> to vector<5x1x16xf32>
      %57 = vector.broadcast %56 : vector<5x1x16xf32> to vector<5x16x16xf32>
      %58 = arith.mulf %55, %57 : vector<5x16x16xf32>
      %cst_43 = arith.constant dense<0.000000e+00> : vector<5x16xf32>
      %59 = vector.multi_reduction <add>, %58, %cst_43 [2] : vector<5x16x16xf32> to vector<5x16xf32>
      %60 = arith.addf %54, %59 : vector<5x16xf32>
      %c0_44 = arith.constant 0 : index
      %c0_45 = arith.constant 0 : index
      %61 = vector.load %arg10[%c0_44, %c0_45] : memref<5x16xf32, #tpu.memory_space<vmem>>, vector<5x16xf32>
      %62 = arith.addf %60, %61 : vector<5x16xf32>
      %c0_46 = arith.constant 0 : index
      %c0_47 = arith.constant 0 : index
      %63 = vector.load %arg14[%c0_46, %c0_47] : memref<5x16xf32, #tpu.memory_space<vmem>>, vector<5x16xf32>
      %64 = arith.mulf %63, %49 : vector<5x16xf32>
      %cst_48 = arith.constant dense<0.000000e+00> : vector<5xf32>
      %65 = vector.multi_reduction <add>, %64, %cst_48 [1] : vector<5x16xf32> to vector<5xf32>
      %66 = vector.shape_cast %65 : vector<5xf32> to vector<5x1xf32>
      %c0_49 = arith.constant 0 : index
      %c0_50 = arith.constant 0 : index
      %67 = vector.load %arg15[%c0_49, %c0_50] : memref<5x1xf32, #tpu.memory_space<vmem>>, vector<5x1xf32>
      %68 = arith.addf %66, %67 : vector<5x1xf32>
      %c0_51 = arith.constant 0 : index
      %c0_52 = arith.constant 0 : index
      %69 = vector.load %arg17[%c0_51, %c0_52] : memref<16x256xf32, #tpu.memory_space<vmem>>, vector<16x256xf32>
      %cst_53 = arith.constant dense<0.000000e+00> : vector<5x256xf32>
      %70 = tpu.matmul %62, %69, %cst_53 {dimension_numbers = #tpu.dot_dimension_numbers<[1], [0], [0], [1], [0, 0, 1, 1], [], []>} : vector<5x16xf32>, vector<16x256xf32>, vector<5x256xf32> -> vector<5x256xf32>
      %71 = vector.broadcast %68 : vector<5x1xf32> to vector<5x256xf32>
      %72 = arith.addf %70, %71 : vector<5x256xf32>
      %c0_54 = arith.constant 0 : index
      %c0_55 = arith.constant 0 : index
      %c0_56 = arith.constant 0 : index
      %73 = vector.load %arg16[%c0_54, %c0_55, %c0_56] : memref<1x5x256xf32, #tpu.memory_space<vmem>>, vector<1x5x256xf32>
      %74 = vector.shape_cast %73 : vector<1x5x256xf32> to vector<5x256xf32>
      %75 = vector.shape_cast %72 : vector<5x256xf32> to vector<1x5x256xf32>
      tpu.vector_store %arg16[%c0_54, %c0_55, %c0_56], %75 {strides = array<i32>} : memref<1x5x256xf32, #tpu.memory_space<vmem>>, vector<1x5x256xf32>,
    } else {
    }
    return
  }
  func.func @transform_0(%arg0: i32, %arg1: i32) -> (i32, i32, i32) {
    %c0_i32 = arith.constant 0 : i32
    %c0_i32_0 = arith.constant 0 : i32
    return %arg0, %c0_i32, %arg1 : i32, i32, i32
  }
  func.func @transform_1(%arg0: i32, %arg1: i32) -> (i32, i32) {
    %c0_i32 = arith.constant 0 : i32
    %c0_i32_0 = arith.constant 0 : i32
    %c0_i32_1 = arith.constant 0 : i32
    return %c0_i32, %c0_i32_0 : i32, i32
  }
  func.func @transform_2(%arg0: i32, %arg1: i32) -> (i32, i32) {
    %c0_i32 = arith.constant 0 : i32
    %c0_i32_0 = arith.constant 0 : i32
    %c0_i32_1 = arith.constant 0 : i32
    return %c0_i32, %c0_i32_0 : i32, i32
  }
  func.func @transform_3(%arg0: i32, %arg1: i32) -> (i32, i32) {
    %c0_i32 = arith.constant 0 : i32
    %c0_i32_0 = arith.constant 0 : i32
    %c0_i32_1 = arith.constant 0 : i32
    return %c0_i32, %c0_i32_0 : i32, i32
  }
  func.func @transform_4(%arg0: i32, %arg1: i32) -> (i32, i32) {
    %c0_i32 = arith.constant 0 : i32
    %c0_i32_0 = arith.constant 0 : i32
    %c0_i32_1 = arith.constant 0 : i32
    return %c0_i32, %c0_i32_0 : i32, i32
  }
  func.func @transform_5(%arg0: i32, %arg1: i32) -> (i32, i32) {
    %c0_i32 = arith.constant 0 : i32
    %c0_i32_0 = arith.constant 0 : i32
    %c0_i32_1 = arith.constant 0 : i32
    return %c0_i32, %c0_i32_0 : i32, i32
  }
  func.func @transform_6(%arg0: i32, %arg1: i32) -> (i32, i32, i32) {
    %c0_i32 = arith.constant 0 : i32
    %c0_i32_0 = arith.constant 0 : i32
    %c0_i32_1 = arith.constant 0 : i32
    %c0_i32_2 = arith.constant 0 : i32
    return %c0_i32, %c0_i32_0, %c0_i32_1 : i32, i32, i32
  }
  func.func @transform_7(%arg0: i32, %arg1: i32) -> (i32, i32, i32) {
    %c0_i32 = arith.constant 0 : i32
    %c0_i32_0 = arith.constant 0 : i32
    %c0_i32_1 = arith.constant 0 : i32
    %c0_i32_2 = arith.constant 0 : i32
    return %c0_i32, %c0_i32_0, %c0_i32_1 : i32, i32, i32
  }
  func.func @transform_8(%arg0: i32, %arg1: i32) -> (i32, i32) {
    %c0_i32 = arith.constant 0 : i32
    %c0_i32_0 = arith.constant 0 : i32
    %c0_i32_1 = arith.constant 0 : i32
    return %c0_i32, %c0_i32_0 : i32, i32
  }
  func.func @transform_9(%arg0: i32, %arg1: i32) -> (i32, i32) {
    %c0_i32 = arith.constant 0 : i32
    %c0_i32_0 = arith.constant 0 : i32
    %c0_i32_1 = arith.constant 0 : i32
    return %c0_i32, %c0_i32_0 : i32, i32
  }
  func.func @transform_10(%arg0: i32, %arg1: i32) -> (i32, i32) {
    %c0_i32 = arith.constant 0 : i32
    %c0_i32_0 = arith.constant 0 : i32
    %c0_i32_1 = arith.constant 0 : i32
    return %c0_i32, %c0_i32_0 : i32, i32
  }
  func.func @transform_11(%arg0: i32, %arg1: i32) -> (i32, i32) {
    %c0_i32 = arith.constant 0 : i32
    %c0_i32_0 = arith.constant 0 : i32
    %c0_i32_1 = arith.constant 0 : i32
    return %c0_i32, %c0_i32_0 : i32, i32
  }
  func.func @transform_12(%arg0: i32, %arg1: i32) -> (i32, i32) {
    %c0_i32 = arith.constant 0 : i32
    %c0_i32_0 = arith.constant 0 : i32
    %c0_i32_1 = arith.constant 0 : i32
    return %c0_i32, %c0_i32_0 : i32, i32
  }
  func.func @transform_13(%arg0: i32, %arg1: i32) -> (i32, i32) {
    %c0_i32 = arith.constant 0 : i32
    %c0_i32_0 = arith.constant 0 : i32
    %c0_i32_1 = arith.constant 0 : i32
    return %c0_i32, %c0_i32_0 : i32, i32
  }
  func.func @transform_14(%arg0: i32, %arg1: i32) -> (i32, i32, i32) {
    %c0_i32 = arith.constant 0 : i32
    %c0_i32_0 = arith.constant 0 : i32
    %c0_i32_1 = arith.constant 0 : i32
    return %arg0, %c0_i32, %c0_i32_0 : i32, i32, i32
  }
}

</mosaic_0001>

<llo_original>
// kernel: tpu_custom_call.1
$region0: #{tpu_custom_call.1}
  #allocation0 [shape = 'u32[]', space=smem, size = 0x4, offset = 0x4, fixed_abs, tag = 'smem constant byte address 0x4 - core index']
  #allocation1 [shape = 'u32[72,128]{1,0:T(1,128)}', space=vmem, size = 0x9000, scoped, tag = 'internal scratch']
  #allocation2 [shape = 'f32[16,256]{1,0:T(8,128)}', space=vmem, size = 0x4000, scoped, tag = 'scratch operand']
  #allocation3 [shape = 'f32[5,16]{1,0:T(8,128)}', space=vmem, size = 0x1000, scoped, tag = 'scratch operand']
  %s0 = inlined_call_operand.hbm [shape: bf16[2,32,256], index: 0, kind: input, shape index: {}]
  %s1 = inlined_call_operand.vmem [shape: bf16[16,32], index: 1, kind: input, shape index: {}]
  %s2 = inlined_call_operand.vmem [shape: f32[16,1], index: 2, kind: input, shape index: {}]
  %s3 = inlined_call_operand.vmem [shape: f32[16,1], index: 3, kind: input, shape index: {}]
  %s4 = inlined_call_operand.vmem [shape: f32[5,16], index: 4, kind: input, shape index: {}]
  %s5 = inlined_call_operand.vmem [shape: f32[5,1], index: 5, kind: input, shape index: {}]
  %s6 = inlined_call_operand.hbm [shape: f32[5,16,16], index: 6, kind: input, shape index: {}]
  %s7 = inlined_call_operand.hbm [shape: f32[5,16,16], index: 7, kind: input, shape index: {}]
  %s8 = inlined_call_operand.vmem [shape: f32[5,16], index: 8, kind: input, shape index: {}]
  %s9 = inlined_call_operand.vmem [shape: f32[5,5], index: 9, kind: input, shape index: {}]
  %s10 = inlined_call_operand.vmem [shape: f32[5,5], index: 10, kind: input, shape index: {}]
  %s11 = inlined_call_operand.vmem [shape: f32[5,5], index: 11, kind: input, shape index: {}]
  %s12 = inlined_call_operand.vmem [shape: f32[5,16], index: 12, kind: input, shape index: {}]
  %s13 = inlined_call_operand.vmem [shape: f32[5,1], index: 13, kind: input, shape index: {}]
  %s14 = inlined_call_operand.vmem [shape: f32[2,5,256], index: 14, kind: output, shape index: {}]
  %s15 = sld [smem:[#allocation0]]
  $region109: #{tpu_custom_call.1} parent=0
    _
  %s17 = ssub.s32 1, %s15
  %s18 = scalar_select 0, %s17, %s15
  $region1: #{tpu_custom_call.1} parent=0
    #allocation4 [shape = 'u8[16384]{0}', space=vmem, size = 0x4000, scoped, tag = 'input window, operand 0']
    #allocation5 [shape = 's32[2]{0}', space=sflag, size = 0x8, scoped, tag = 'scoped memory for tpu_custom_call.1']
    #allocation6 [shape = 'u8[40960]{0}', space=vmem, size = 0xa000, scoped, tag = 'input window, operand 6, single buffered']
    #allocation7 [shape = 's32[1]{0}', space=sflag, size = 0x4, scoped, tag = 'scoped memory for tpu_custom_call.1']
    #allocation8 [shape = 'u8[40960]{0}', space=vmem, size = 0xa000, scoped, tag = 'input window, operand 7, single buffered']
    %19 = vsyncpa [#allocation5], 0
    %s20 = scalar_lea.sflag [#allocation5], 1
    %21 = vsyncpa %s20, 0
    %22 = vsyncpa [#allocation7], 0
    loop: start=0, step=1, limit=6
    $region2: #{tpu_custom_call.1} parent=1 // loop_pre_header
      _
    $region3: #{tpu_custom_call.1} parent=1 // loop_header
      %s24 = sphi 0, %s28
      %p25 = scmp.ge.s32.totalorder %s24, 6
      %s31 = sphi 0, %s43
      %s32 = sphi 0, %s39
      %s33 = sphi 0, %s31
      %s34 = sphi 0, %s32
      %s35 = sphi 0, %s33
      %s36 = sphi 0, %s34
      %s48 = sphi 0, %s50
      %s51 = sphi 0, %s48
      %s52 = sphi 0, %s51
      %s68 = sphi 0, %s52
      %s72 = sphi 0, %s72
      %s74 = sphi 0, %s72
      %s75 = sphi 0, %s74
      %s89 = sphi 0, %s75
      %s93 = sphi 0, %s93
      %s95 = sphi 0, %s93
      %s96 = sphi 0, %s95
      %s110 = sphi 0, %s96
      %s114 = sphi 0, %s114
      %s116 = sphi 0, %s114
      %s117 = sphi 0, %s116
      %s131 = sphi 0, %s117
      %s135 = sphi 0, %s135
      %s137 = sphi 0, %s135
      %s138 = sphi 0, %s137
      %s152 = sphi 0, %s138
      %s156 = sphi 0, %s156
      %s158 = sphi 0, %s156
      %s159 = sphi 0, %s158
      %s173 = sphi 0, %s159
      %s177 = sphi 0, %s177
      %s179 = sphi 0, %s177
      %s180 = sphi 0, %s179
      %s194 = sphi 0, %s180
      %s198 = sphi 0, %s198
      %s200 = sphi 0, %s198
      %s201 = sphi 0, %s200
      %s215 = sphi 0, %s201
      %s219 = sphi 0, %s219
      %s221 = sphi 0, %s219
      %s222 = sphi 0, %s221
      %s236 = sphi 0, %s222
      %s240 = sphi 0, %s240
      %s242 = sphi 0, %s240
      %s243 = sphi 0, %s242
      %s257 = sphi 0, %s243
      %s261 = sphi 0, %s261
      %s263 = sphi 0, %s261
      %s264 = sphi 0, %s263
      %s278 = sphi 0, %s264
      %s282 = sphi 0, %s282
      %s284 = sphi 0, %s282
      %s285 = sphi 0, %s284
      %s299 = sphi 0, %s285
      %s303 = sphi 0, %s303
      %s305 = sphi 0, %s303
      %s306 = sphi 0, %s305
      %s320 = sphi 0, %s306
      %s324 = sphi 0, %s324
      %s326 = sphi 0, %s324
      %s327 = sphi 0, %s326
      %s341 = sphi 0, %s327
      %s347 = sphi 0, %s349
      %s350 = sphi 0, %s347
      %s351 = sphi 0, %s350
      %s367 = sphi 0, %s351
    $region4: #{tpu_custom_call.1} parent=1 // loop_header_branch
      %27 = sbr.rel (%p25) target = $region8
    $region5: #{tpu_custom_call.1} parent=1 // loop_body
      %s29 = ssub.s32 %s24, 1
      %s30 = ssub.s32 %s24, 2
      %s37 = sadd.s32 1, %s32
      %p38 = scmp.ge.s32.totalorder %s37, 2
      %s39 = scalar_select %p38, 0, %s37
      %s40 = sadd.s32 1, %s31
      %s41 = scalar_select %p38, %s40, %s31
      %p42 = scmp.ge.s32.totalorder %s41, 2
      %s43 = scalar_select %p42, 0, %s41
      %s44 = ssub.s32 %s31, %s43
      %s45 = ssub.s32 %s32, %s39
      %s46 = sor.u32 %s44, %s45
      %p47 = scmp.eq.s32.totalorder %s46, 0
      %s49 = sadd.s32 %s48, 1
      %s50 = scalar_select %p47, %s48, %s49
      %p53 = pneg %p47
      %p54 = scmp.eq.s32.totalorder %s24, 3
      %p55 = por %p53, %p54
      %p56 = scmp.ne.s32.totalorder %s48, %s51
      %p57 = scmp.eq.s32.totalorder %s24, 0
      %p58 = por %p56, %p57
      %p59 = scmp.ne.s32.totalorder %s48, %s51
      %p60 = scmp.eq.s32.totalorder %s29, 3
      %p61 = por %p59, %p60
      %p62 = scmp.ne.s32.totalorder %s51, %s52
      %p63 = scmp.eq.s32.totalorder %s29, 0
      %p64 = por %p62, %p63
      %p65 = scmp.ne.s32.totalorder %s51, %s52
      %p66 = scmp.eq.s32.totalorder %s30, 3
      %p67 = por %p65, %p66
      %p69 = scmp.ne.s32.totalorder %s52, %s68
      %p70 = scmp.eq.s32.totalorder %s30, 0
      %p71 = por %p69, %p70
      %s73 = sadd.s32 %s72, 1
      %p76 = scmp.eq.s32.totalorder %s24, 3
      %p77 = scmp.ne.s32.totalorder %s72, %s74
      %p78 = scmp.eq.s32.totalorder %s24, 0
      %p79 = por %p77, %p78
      %p80 = scmp.ne.s32.totalorder %s72, %s74
      %p81 = scmp.eq.s32.totalorder %s29, 3
      %p82 = por %p80, %p81
      %p83 = scmp.ne.s32.totalorder %s74, %s75
      %p84 = scmp.eq.s32.totalorder %s29, 0
      %p85 = por %p83, %p84
      %p86 = scmp.ne.s32.totalorder %s74, %s75
      %p87 = scmp.eq.s32.totalorder %s30, 3
      %p88 = por %p86, %p87
      %p90 = scmp.ne.s32.totalorder %s75, %s89
      %p91 = scmp.eq.s32.totalorder %s30, 0
      %p92 = por %p90, %p91
      %s94 = sadd.s32 %s93, 1
      %p97 = scmp.eq.s32.totalorder %s24, 3
      %p98 = scmp.ne.s32.totalorder %s93, %s95
      %p99 = scmp.eq.s32.totalorder %s24, 0
      %p100 = por %p98, %p99
      %p101 = scmp.ne.s32.totalorder %s93, %s95
      %p102 = scmp.eq.s32.totalorder %s29, 3
      %p103 = por %p101, %p102
      %p104 = scmp.ne.s32.totalorder %s95, %s96
      %p105 = scmp.eq.s32.totalorder %s29, 0
      %p106 = por %p104, %p105
      %p107 = scmp.ne.s32.totalorder %s95, %s96
      %p108 = scmp.eq.s32.totalorder %s30, 3
      %p109 = por %p107, %p108
      %p111 = scmp.ne.s32.totalorder %s96, %s110
      %p112 = scmp.eq.s32.totalorder %s30, 0
      %p113 = por %p111, %p112
      %s115 = sadd.s32 %s114, 1
      %p118 = scmp.eq.s32.totalorder %s24, 3
      %p119 = scmp.ne.s32.totalorder %s114, %s116
      %p120 = scmp.eq.s32.totalorder %s24, 0
      %p121 = por %p119, %p120
      %p122 = scmp.ne.s32.totalorder %s114, %s116
      %p123 = scmp.eq.s32.totalorder %s29, 3
      %p124 = por %p122, %p123
      %p125 = scmp.ne.s32.totalorder %s116, %s117
      %p126 = scmp.eq.s32.totalorder %s29, 0
      %p127 = por %p125, %p126
      %p128 = scmp.ne.s32.totalorder %s116, %s117
      %p129 = scmp.eq.s32.totalorder %s30, 3
      %p130 = por %p128, %p129
      %p132 = scmp.ne.s32.totalorder %s117, %s131
      %p133 = scmp.eq.s32.totalorder %s30, 0
      %p134 = por %p132, %p133
      %s136 = sadd.s32 %s135, 1
      %p139 = scmp.eq.s32.totalorder %s24, 3
      %p140 = scmp.ne.s32.totalorder %s135, %s137
      %p141 = scmp.eq.s32.totalorder %s24, 0
      %p142 = por %p140, %p141
      %p143 = scmp.ne.s32.totalorder %s135, %s137
      %p144 = scmp.eq.s32.totalorder %s29, 3
      %p145 = por %p143, %p144
      %p146 = scmp.ne.s32.totalorder %s137, %s138
      %p147 = scmp.eq.s32.totalorder %s29, 0
      %p148 = por %p146, %p147
      %p149 = scmp.ne.s32.totalorder %s137, %s138
      %p150 = scmp.eq.s32.totalorder %s30, 3
      %p151 = por %p149, %p150
      %p153 = scmp.ne.s32.totalorder %s138, %s152
      %p154 = scmp.eq.s32.totalorder %s30, 0
      %p155 = por %p153, %p154
      %s157 = sadd.s32 %s156, 1
      %p160 = scmp.eq.s32.totalorder %s24, 3
      %p161 = scmp.ne.s32.totalorder %s156, %s158
      %p162 = scmp.eq.s32.totalorder %s24, 0
      %p163 = por %p161, %p162
      %p164 = scmp.ne.s32.totalorder %s156, %s158
      %p165 = scmp.eq.s32.totalorder %s29, 3
      %p166 = por %p164, %p165
      %p167 = scmp.ne.s32.totalorder %s158, %s159
      %p168 = scmp.eq.s32.totalorder %s29, 0
      %p169 = por %p167, %p168
      %p170 = scmp.ne.s32.totalorder %s158, %s159
      %p171 = scmp.eq.s32.totalorder %s30, 3
      %p172 = por %p170, %p171
      %p174 = scmp.ne.s32.totalorder %s159, %s173
      %p175 = scmp.eq.s32.totalorder %s30, 0
      %p176 = por %p174, %p175
      %s178 = sadd.s32 %s177, 1
      %p181 = scmp.eq.s32.totalorder %s24, 3
      %p182 = scmp.ne.s32.totalorder %s177, %s179
      %p183 = scmp.eq.s32.totalorder %s24, 0
      %p184 = por %p182, %p183
      %p185 = scmp.ne.s32.totalorder %s177, %s179
      %p186 = scmp.eq.s32.totalorder %s29, 3
      %p187 = por %p185, %p186
      %p188 = scmp.ne.s32.totalorder %s179, %s180
      %p189 = scmp.eq.s32.totalorder %s29, 0
      %p190 = por %p188, %p189
      %p191 = scmp.ne.s32.totalorder %s179, %s180
      %p192 = scmp.eq.s32.totalorder %s30, 3
      %p193 = por %p191, %p192
      %p195 = scmp.ne.s32.totalorder %s180, %s194
      %p196 = scmp.eq.s32.totalorder %s30, 0
      %p197 = por %p195, %p196
      %s199 = sadd.s32 %s198, 1
      %p202 = scmp.eq.s32.totalorder %s24, 3
      %p203 = scmp.ne.s32.totalorder %s198, %s200
      %p204 = scmp.eq.s32.totalorder %s24, 0
      %p205 = por %p203, %p204
      %p206 = scmp.ne.s32.totalorder %s198, %s200
      %p207 = scmp.eq.s32.totalorder %s29, 3
      %p208 = por %p206, %p207
      %p209 = scmp.ne.s32.totalorder %s200, %s201
      %p210 = scmp.eq.s32.totalorder %s29, 0
      %p211 = por %p209, %p210
      %p212 = scmp.ne.s32.totalorder %s200, %s201
      %p213 = scmp.eq.s32.totalorder %s30, 3
      %p214 = por %p212, %p213
      %p216 = scmp.ne.s32.totalorder %s201, %s215
      %p217 = scmp.eq.s32.totalorder %s30, 0
      %p218 = por %p216, %p217
      %s220 = sadd.s32 %s219, 1
      %p223 = scmp.eq.s32.totalorder %s24, 3
      %p224 = scmp.ne.s32.totalorder %s219, %s221
      %p225 = scmp.eq.s32.totalorder %s24, 0
      %p226 = por %p224, %p225
      %p227 = scmp.ne.s32.totalorder %s219, %s221
      %p228 = scmp.eq.s32.totalorder %s29, 3
      %p229 = por %p227, %p228
      %p230 = scmp.ne.s32.totalorder %s221, %s222
      %p231 = scmp.eq.s32.totalorder %s29, 0
      %p232 = por %p230, %p231
      %p233 = scmp.ne.s32.totalorder %s221, %s222
      %p234 = scmp.eq.s32.totalorder %s30, 3
      %p235 = por %p233, %p234
      %p237 = scmp.ne.s32.totalorder %s222, %s236
      %p238 = scmp.eq.s32.totalorder %s30, 0
      %p239 = por %p237, %p238
      %s241 = sadd.s32 %s240, 1
      %p244 = scmp.eq.s32.totalorder %s24, 3
      %p245 = scmp.ne.s32.totalorder %s240, %s242
      %p246 = scmp.eq.s32.totalorder %s24, 0
      %p247 = por %p245, %p246
      %p248 = scmp.ne.s32.totalorder %s240, %s242
      %p249 = scmp.eq.s32.totalorder %s29, 3
      %p250 = por %p248, %p249
      %p251 = scmp.ne.s32.totalorder %s242, %s243
      %p252 = scmp.eq.s32.totalorder %s29, 0
      %p253 = por %p251, %p252
      %p254 = scmp.ne.s32.totalorder %s242, %s243
      %p255 = scmp.eq.s32.totalorder %s30, 3
      %p256 = por %p254, %p255
      %p258 = scmp.ne.s32.totalorder %s243, %s257
      %p259 = scmp.eq.s32.totalorder %s30, 0
      %p260 = por %p258, %p259
      %s262 = sadd.s32 %s261, 1
      %p265 = scmp.eq.s32.totalorder %s24, 3
      %p266 = scmp.ne.s32.totalorder %s261, %s263
      %p267 = scmp.eq.s32.totalorder %s24, 0
      %p268 = por %p266, %p267
      %p269 = scmp.ne.s32.totalorder %s261, %s263
      %p270 = scmp.eq.s32.totalorder %s29, 3
      %p271 = por %p269, %p270
      %p272 = scmp.ne.s32.totalorder %s263, %s264
      %p273 = scmp.eq.s32.totalorder %s29, 0
      %p274 = por %p272, %p273
      %p275 = scmp.ne.s32.totalorder %s263, %s264
      %p276 = scmp.eq.s32.totalorder %s30, 3
      %p277 = por %p275, %p276
      %p279 = scmp.ne.s32.totalorder %s264, %s278
      %p280 = scmp.eq.s32.totalorder %s30, 0
      %p281 = por %p279, %p280
      %s283 = sadd.s32 %s282, 1
      %p286 = scmp.eq.s32.totalorder %s24, 3
      %p287 = scmp.ne.s32.totalorder %s282, %s284
      %p288 = scmp.eq.s32.totalorder %s24, 0
      %p289 = por %p287, %p288
      %p290 = scmp.ne.s32.totalorder %s282, %s284
      %p291 = scmp.eq.s32.totalorder %s29, 3
      %p292 = por %p290, %p291
      %p293 = scmp.ne.s32.totalorder %s284, %s285
      %p294 = scmp.eq.s32.totalorder %s29, 0
      %p295 = por %p293, %p294
      %p296 = scmp.ne.s32.totalorder %s284, %s285
      %p297 = scmp.eq.s32.totalorder %s30, 3
      %p298 = por %p296, %p297
      %p300 = scmp.ne.s32.totalorder %s285, %s299
      %p301 = scmp.eq.s32.totalorder %s30, 0
      %p302 = por %p300, %p301
      %s304 = sadd.s32 %s303, 1
      %p307 = scmp.eq.s32.totalorder %s24, 3
      %p308 = scmp.ne.s32.totalorder %s303, %s305
      %p309 = scmp.eq.s32.totalorder %s24, 0
      %p310 = por %p308, %p309
      %p311 = scmp.ne.s32.totalorder %s303, %s305
      %p312 = scmp.eq.s32.totalorder %s29, 3
      %p313 = por %p311, %p312
      %p314 = scmp.ne.s32.totalorder %s305, %s306
      %p315 = scmp.eq.s32.totalorder %s29, 0
      %p316 = por %p314, %p315
      %p317 = scmp.ne.s32.totalorder %s305, %s306
      %p318 = scmp.eq.s32.totalorder %s30, 3
      %p319 = por %p317, %p318
      %p321 = scmp.ne.s32.totalorder %s306, %s320
      %p322 = scmp.eq.s32.totalorder %s30, 0
      %p323 = por %p321, %p322
      %s325 = sadd.s32 %s324, 1
      %p328 = scmp.eq.s32.totalorder %s24, 3
      %p329 = scmp.ne.s32.totalorder %s324, %s326
      %p330 = scmp.eq.s32.totalorder %s24, 0
      %p331 = por %p329, %p330
      %p332 = scmp.ne.s32.totalorder %s324, %s326
      %p333 = scmp.eq.s32.totalorder %s29, 3
      %p334 = por %p332, %p333
      %p335 = scmp.ne.s32.totalorder %s326, %s327
      %p336 = scmp.eq.s32.totalorder %s29, 0
      %p337 = por %p335, %p336
      %p338 = scmp.ne.s32.totalorder %s326, %s327
      %p339 = scmp.eq.s32.totalorder %s30, 3
      %p340 = por %p338, %p339
      %p342 = scmp.ne.s32.totalorder %s327, %s341
      %p343 = scmp.eq.s32.totalorder %s30, 0
      %p344 = por %p342, %p343
      %s345 = ssub.s32 %s31, %s43
      %p346 = scmp.eq.s32.totalorder %s345, 0
      %s348 = sadd.s32 %s347, 1
      %s349 = scalar_select %p346, %s347, %s348
      %p352 = pneg %p346
      %p353 = scmp.eq.s32.totalorder %s24, 3
      %p354 = por %p352, %p353
      %p355 = scmp.ne.s32.totalorder %s347, %s350
      %p356 = scmp.eq.s32.totalorder %s24, 0
      %p357 = por %p355, %p356
      %p358 = scmp.ne.s32.totalorder %s347, %s350
      %p359 = scmp.eq.s32.totalorder %s29, 3
      %p360 = por %p358, %p359
      %p361 = scmp.ne.s32.totalorder %s350, %s351
      %p362 = scmp.eq.s32.totalorder %s29, 0
      %p363 = por %p361, %p362
      %p364 = scmp.ne.s32.totalorder %s350, %s351
      %p365 = scmp.eq.s32.totalorder %s30, 3
      %p366 = por %p364, %p365
      %p368 = scmp.ne.s32.totalorder %s351, %s367
      %p369 = scmp.eq.s32.totalorder %s30, 0
      %p370 = por %p368, %p369
      %p371 = scmp.le.s32.totalorder 1, %s24
      %p372 = scmp.lt.s32.totalorder %s24, 5
      %p373 = pnand %p371, %p372
      %p374 = pneg %p373
      // Predicated region
      $region9: #{tpu_custom_call.1} parent=5 // pred_check
        _
      $region10: #{tpu_custom_call.1} parent=5 // pred_check_branch
        %376 = sbr.rel (%p373) target = $region12
      $region11: #{tpu_custom_call.1} parent=5 // pred_region
        %s377 = ssub.s32 %s24, 1
        // Predicated region
        $region13: #{tpu_custom_call.1} parent=11 // pred_check
          %p378 = pneg %p85
        $region14: #{tpu_custom_call.1} parent=11 // pred_check_branch
          %380 = sbr.rel (%p378) target = $region16
        $region15: #{tpu_custom_call.1} parent=11 // pred_region
          _
        $region16: #{tpu_custom_call.1} parent=11 // pred_fallthru
          _
        // Predicated region
        $region17: #{tpu_custom_call.1} parent=11 // pred_check
          %p381 = pneg %p106
        $region18: #{tpu_custom_call.1} parent=11 // pred_check_branch
          %383 = sbr.rel (%p381) target = $region20
        $region19: #{tpu_custom_call.1} parent=11 // pred_region
          _
        $region20: #{tpu_custom_call.1} parent=11 // pred_fallthru
          _
        // Predicated region
        $region21: #{tpu_custom_call.1} parent=11 // pred_check
          %p384 = pneg %p127
        $region22: #{tpu_custom_call.1} parent=11 // pred_check_branch
          %386 = sbr.rel (%p384) target = $region24
        $region23: #{tpu_custom_call.1} parent=11 // pred_region
          _
        $region24: #{tpu_custom_call.1} parent=11 // pred_fallthru
          _
        // Predicated region
        $region25: #{tpu_custom_call.1} parent=11 // pred_check
          %p387 = pneg %p148
        $region26: #{tpu_custom_call.1} parent=11 // pred_check_branch
          %389 = sbr.rel (%p387) target = $region28
        $region27: #{tpu_custom_call.1} parent=11 // pred_region
          _
        $region28: #{tpu_custom_call.1} parent=11 // pred_fallthru
          _
        // Predicated region
        $region29: #{tpu_custom_call.1} parent=11 // pred_check
          %p390 = pneg %p169
        $region30: #{tpu_custom_call.1} parent=11 // pred_check_branch
          %392 = sbr.rel (%p390) target = $region32
        $region31: #{tpu_custom_call.1} parent=11 // pred_region
          _
        $region32: #{tpu_custom_call.1} parent=11 // pred_fallthru
          _
        // Predicated region
        $region33: #{tpu_custom_call.1} parent=11 // pred_check
          %p393 = pneg %p190
        $region34: #{tpu_custom_call.1} parent=11 // pred_check_branch
          %395 = sbr.rel (%p393) target = $region36
        $region35: #{tpu_custom_call.1} parent=11 // pred_region
          %397 = vsyncadd [#allocation7], 0
          %s398 = sshll.u32 %s6, 4
          %s399 = int_to_ptr.hbm [resolvable:$true] %s398
          %s400 = sshll.u32 [#allocation6], 4
          %s401 = int_to_ptr.vmem [resolvable:$true] %s400
          %406 = dma.hbm_to_vmem [thread:$0]  %s399, 1280, %s401, [#allocation7], 128, 128, 8
        $region36: #{tpu_custom_call.1} parent=11 // pred_fallthru
          _
        // Predicated region
        $region37: #{tpu_custom_call.1} parent=11 // pred_check
          %p407 = pneg %p211
        $region38: #{tpu_custom_call.1} parent=11 // pred_check_branch
          %409 = sbr.rel (%p407) target = $region40
        $region39: #{tpu_custom_call.1} parent=11 // pred_region
          %411 = vsyncadd [#allocation7], 0
          %s412 = sshll.u32 %s7, 4
          %s413 = int_to_ptr.hbm [resolvable:$true] %s412
          %s414 = sshll.u32 [#allocation8], 4
          %s415 = int_to_ptr.vmem [resolvable:$true] %s414
          %420 = dma.hbm_to_vmem [thread:$0]  %s413, 1280, %s415, [#allocation7], 128, 128, 8
        $region40: #{tpu_custom_call.1} parent=11 // pred_fallthru
          _
        // Predicated region
        $region41: #{tpu_custom_call.1} parent=11 // pred_check
          %p421 = pneg %p232
        $region42: #{tpu_custom_call.1} parent=11 // pred_check_branch
          %423 = sbr.rel (%p421) target = $region44
        $region43: #{tpu_custom_call.1} parent=11 // pred_region
          _
        $region44: #{tpu_custom_call.1} parent=11 // pred_fallthru
          _
        // Predicated region
        $region45: #{tpu_custom_call.1} parent=11 // pred_check
          %p424 = pneg %p253
        $region46: #{tpu_custom_call.1} parent=11 // pred_check_branch
          %426 = sbr.rel (%p424) target = $region48
        $region47: #{tpu_custom_call.1} parent=11 // pred_region
          _
        $region48: #{tpu_custom_call.1} parent=11 // pred_fallthru
          _
        // Predicated region
        $region49: #{tpu_custom_call.1} parent=11 // pred_check
          %p427 = pneg %p274
        $region50: #{tpu_custom_call.1} parent=11 // pred_check_branch
          %429 = sbr.rel (%p427) target = $region52
        $region51: #{tpu_custom_call.1} parent=11 // pred_region
          _
        $region52: #{tpu_custom_call.1} parent=11 // pred_fallthru
          _
        // Predicated region
        $region53: #{tpu_custom_call.1} parent=11 // pred_check
          %p430 = pneg %p295
        $region54: #{tpu_custom_call.1} parent=11 // pred_check_branch
          %432 = sbr.rel (%p430) target = $region56
        $region55: #{tpu_custom_call.1} parent=11 // pred_region
          _
        $region56: #{tpu_custom_call.1} parent=11 // pred_fallthru
          _
        // Predicated region
        $region57: #{tpu_custom_call.1} parent=11 // pred_check
          %p433 = pneg %p316
        $region58: #{tpu_custom_call.1} parent=11 // pred_check_branch
          %435 = sbr.rel (%p433) target = $region60
        $region59: #{tpu_custom_call.1} parent=11 // pred_region
          _
        $region60: #{tpu_custom_call.1} parent=11 // pred_fallthru
          _
        // Predicated region
        $region61: #{tpu_custom_call.1} parent=11 // pred_check
          %p436 = pneg %p337
        $region62: #{tpu_custom_call.1} parent=11 // pred_check_branch
          %438 = sbr.rel (%p436) target = $region64
        $region63: #{tpu_custom_call.1} parent=11 // pred_region
          _
        $region64: #{tpu_custom_call.1} parent=11 // pred_fallthru
          _
      $region12: #{tpu_custom_call.1} parent=5 // pred_fallthru
        _
      %p439 = scmp.lt.s32.totalorder %s24, 4
      // Predicated region
      $region65: #{tpu_custom_call.1} parent=5 // pred_check
        %p440 = pneg %p439
      $region66: #{tpu_custom_call.1} parent=5 // pred_check_branch
        %442 = sbr.rel (%p440) target = $region68
      $region67: #{tpu_custom_call.1} parent=5 // pred_region
        // Predicated region
        $region69: #{tpu_custom_call.1} parent=67 // pred_check
          %p443 = pneg %p58
        $region70: #{tpu_custom_call.1} parent=67 // pred_check_branch
          %445 = sbr.rel (%p443) target = $region72
        $region71: #{tpu_custom_call.1} parent=67 // pred_region
          %s446 = sand.u32 %s48, 1
          %s447 = scalar_lea.sflag [#allocation5], %s446
          %s448 = sand.u32 %s48, 1
          %s449 = smul.addr %s448, 16
          %s450 = scalar_lea.vmem [#allocation4], %s449
          %452 = vsyncadd %s447, 0
          %s453 = smul.addr %s31, 8
          %s454 = sadd.s32 %s32, %s453
          %s455 = smul.addr %s454, 4
          %s456 = scalar_lea.hbm %s0, %s455
          %s457 = sshll.u32 %s456, 4
          %s458 = int_to_ptr.hbm [resolvable:$true] %s457
          %s459 = sshll.u32 %s450, 4
          %s460 = int_to_ptr.vmem [resolvable:$true] %s459
          %465 = dma.hbm_to_vmem [thread:$0]  %s458, 256, %s460, %s447, 128, 64, 4
        $region72: #{tpu_custom_call.1} parent=67 // pred_fallthru
          _
      $region68: #{tpu_custom_call.1} parent=5 // pred_fallthru
        _
      %p466 = scmp.le.s32.totalorder 1, %s24
      %p467 = scmp.lt.s32.totalorder %s24, 5
      %p468 = pnand %p466, %p467
      %p469 = pneg %p468
      // Predicated region
      $region73: #{tpu_custom_call.1} parent=5 // pred_check
        _
      $region74: #{tpu_custom_call.1} parent=5 // pred_check_branch
        %471 = sbr.rel (%p468) target = $region76
      $region75: #{tpu_custom_call.1} parent=5 // pred_region
        %s472 = ssub.s32 %s24, 1
        %s473 = sand.u32 %s51, 1
        %s474 = scalar_lea.sflag [#allocation5], %s473
        %s475 = sand.u32 %s51, 1
        %s476 = smul.addr %s475, 16
        %s477 = scalar_lea.vmem [#allocation4], %s476
        // Predicated region
        $region77: #{tpu_custom_call.1} parent=75 // pred_check
          %p478 = pneg %p64
        $region78: #{tpu_custom_call.1} parent=75 // pred_check_branch
          %480 = sbr.rel (%p478) target = $region80
        $region79: #{tpu_custom_call.1} parent=75 // pred_region
          %482 = dma.done %s474, 256
        $region80: #{tpu_custom_call.1} parent=75 // pred_fallthru
          _
        // Predicated region
        $region81: #{tpu_custom_call.1} parent=75 // pred_check
          %p483 = pneg %p190
        $region82: #{tpu_custom_call.1} parent=75 // pred_check_branch
          %485 = sbr.rel (%p483) target = $region84
        $region83: #{tpu_custom_call.1} parent=75 // pred_region
          %487 = dma.done [#allocation7], 1280
        $region84: #{tpu_custom_call.1} parent=75 // pred_fallthru
          _
        // Predicated region
        $region85: #{tpu_custom_call.1} parent=75 // pred_check
          %p488 = pneg %p211
        $region86: #{tpu_custom_call.1} parent=75 // pred_check_branch
          %490 = sbr.rel (%p488) target = $region88
        $region87: #{tpu_custom_call.1} parent=75 // pred_region
          %492 = dma.done [#allocation7], 1280
        $region88: #{tpu_custom_call.1} parent=75 // pred_fallthru
          _
        %s493 = sand.u32 %s51, 1
        %s494 = scalar_lea.sflag [#allocation5], %s493
        %s495 = sand.u32 %s51, 1
        %s496 = smul.addr %s495, 16
        %s497 = scalar_lea.vmem [#allocation4], %s496
        %p498 = pneg %p64
        %p499 = pneg %p61
        %p500 = pneg %p85
        %p501 = pneg %p82
        %p502 = pneg %p106
        %p503 = pneg %p103
        %p504 = pneg %p127
        %p505 = pneg %p124
        %p506 = pneg %p148
        %p507 = pneg %p145
        %p508 = pneg %p169
        %p509 = pneg %p166
        %p510 = pneg %p190
        %p511 = pneg %p187
        %p512 = pneg %p211
        %p513 = pneg %p208
        %p514 = pneg %p232
        %p515 = pneg %p229
        %p516 = pneg %p253
        %p517 = pneg %p250
        %p518 = pneg %p274
        %p519 = pneg %p271
        %p520 = pneg %p295
        %p521 = pneg %p292
        %p522 = pneg %p316
        %p523 = pneg %p313
        %p524 = pneg %p337
        %p525 = pneg %p334
        %p526 = pneg %p363
        %p527 = pneg %p360
        %p528 = scmp.lt.s32.totalorder %s33, 1
        %s529 = scalar_select %p528, %s33, 1
        %s530 = smul.addr %s529, 2
        %s531 = smul.addr %s530, 8
        %s532 = scalar_lea.vmem %s14, %s531
        %p533 = scmp.lt.s32.totalorder %s33, 1
        %s534 = scalar_select %p533, %s33, 1
        %s535 = smul.addr %s534, 2
        %s536 = smul.addr %s535, 8
        %s537 = scalar_lea.vmem %s14, %s536
        %p539 = scmp.eq.s32.totalorder %s34, 0
        // Predicated region
        $region89: #{tpu_custom_call.1} parent=75 // pred_check
          %p540 = pneg %p539
        $region90: #{tpu_custom_call.1} parent=75 // pred_check_branch
          %542 = sbr.rel (%p540) target = $region92
        $region91: #{tpu_custom_call.1} parent=75 // pred_region
          %vm543 = vcmask 126976
          %544 = vst.msk [vmem:[#allocation3] sm:$0x1f] %vm543, 0.0
        $region92: #{tpu_custom_call.1} parent=75 // pred_fallthru
          _
        %v545 = vld [vmem:[%s1] sm:$0xf]
        %v546 = vld [vmem:[%s1 + $0x4] sm:$0xf]
        %v547 = vld [vmem:[%s477] sm:$0xf]
        %v548 = vld [vmem:[%s477 + $0x4] sm:$0xf]
        %v549 = vld [vmem:[%s477 + $0x8] sm:$0xf]
        %v550 = vld [vmem:[%s477 + $0xc] sm:$0xf]
        %v553 = vunpack.c.l.b16 %v545
        %v554 = vunpack.c.l.b16 %v546
        %v555 = vpack.c.b16 %v554, %v553
        %v560 = vunpack.c.l.b16 %v547
        %v561 = vunpack.c.l.b16 %v548
        %v562 = vunpack.c.l.b16 %v549
        %v563 = vunpack.c.l.b16 %v550
        %v564 = vpack.c.b16 %v561, %v560
        %v565 = vpack.c.b16 %v563, %v562
        %vm568 = vcmask 261120
        %v570 = vsel %vm568, %v555, 0
        %572 = vmatpush.bf16.msra.mxu0 0
        %573 = vmatpush.bf16.msra.mxu0 0
        %574 = vmatpush.bf16.msra.mxu0 0
        %575 = vmatpush.bf16.msra.mxu0 0
        %576 = vmatpush.bf16.msra.mxu0 0
        %577 = vmatpush.bf16.msra.mxu0 0
        %578 = vmatpush.bf16.msra.mxu0 %v565
        %579 = vmatpush.bf16.msra.mxu0 %v564
        %580 = vmatmul.bf16.gmra.mxu0 %v570
        %v581 = vpop.f32.mrf.mxu0
        %v582 = vadd.f32 0.0, %v581
        %v583 = vpop.f32.mrf.mxu0
        %v584 = vadd.f32 0.0, %v583
        %585 = vdwg.mxu0
        %v586 = vld [vmem:[%s2] sm:$0xff]
        %v587 = vld [vmem:[%s2 + $0x8] sm:$0xff]
        %589 = vset.pattern.permute.xlu0 0
        %590 = vperm.xlu0 %589, %v586
        %v591 = vpop.permute.xlu0 %590
        %594 = vset.pattern.permute.xlu0 0
        %595 = vperm.xlu0 %594, %v587
        %v596 = vpop.permute.xlu0 %595
        %v598 = vmul.f32 %v591, %v582
        %v599 = vmul.f32 %v596, %v584
        %v600 = vld [vmem:[%s3] sm:$0xff]
        %v601 = vld [vmem:[%s3 + $0x8] sm:$0xff]
        %603 = vset.pattern.permute.xlu0 0
        %604 = vperm.xlu0 %603, %v600
        %v605 = vpop.permute.xlu0 %604
        %608 = vset.pattern.permute.xlu0 0
        %609 = vperm.xlu0 %608, %v601
        %v610 = vpop.permute.xlu0 %609
        %v612 = vadd.f32 %v598, %v605
        %v613 = vadd.f32 %v599, %v610
        %v614 = vmax.f32 %v612, 0.0
        %v615 = vmax.f32 %v613, 0.0
        %s616 = smul.u32 %s34, 128
        %s617 = sshra.s32 %s616, 7
        %s618 = sand.u32 %s616, 127
        %s619 = smul.addr %s617, 8
        %s620 = scalar_lea.vmem [#allocation2], %s619
        %621 = vst [vmem:[%s620] sm:$0xff] %v614
        %622 = vst [vmem:[%s620 + $0x10] sm:$0xff] %v615
        %v623 = vld [vmem:[%s4] sm:$0x1f]
        %v624 = vld [vmem:[%s5] sm:$0x1f]
        %626 = vset.pattern.permute.xlu0 0
        %627 = vperm.xlu0 %626, %v624
        %v628 = vpop.permute.xlu0 %627
        %vm630 = vcmask 130048
        %v632 = vsel %vm630, %v623, 0
        %634 = vmatpush.msra.mxu0 0.0
        %635 = vmatpush.msra.mxu0 0.0
        %636 = vmatpush.msra.mxu0 0.0
        %637 = vmatpush.msra.mxu0 0.0
        %638 = vmatpush.msra.mxu0 0.0
        %639 = vmatpush.msra.mxu0 0.0
        %640 = vmatpush.msra.mxu0 0.0
        %641 = vmatpush.msra.mxu0 0.0
        %642 = vmatpush.msra.mxu0 0.0
        %643 = vmatpush.msra.mxu0 0.0
        %644 = vmatpush.msra.mxu0 0.0
        %645 = vmatpush.msra.mxu0 0.0
        %646 = vmatpush.msra.mxu0 0.0
        %647 = vmatpush.msra.mxu0 0.0
        %648 = vmatpush.msra.mxu0 %v615
        %649 = vmatpush.msra.mxu0 %v614
        %650 = vmatmul.f32.gmra.mxu0 %v632
        %v651 = vpop.f32.mrf.mxu0
        %v652 = vadd.f32 %v628, %v651
        %653 = vdwg.mxu0
        %vm654 = vcmask 1044480
        %v655 = vsel %vm654, %v652, -inf
        %v656 = vrot.slane %v655, 4
        %v657 = vmax.f32 %v655, %v656
        %v658 = vrot.slane %v657, 2
        %v659 = vmax.f32 %v657, %v658
        %v660 = vrot.slane %v659, 1
        %v661 = vmax.f32 %v659, %v660
        %v662 = vsub.f32 %v652, %v661
        %v663 = vmul.f32 %v662, 1.442695
        %v664 = vpow.pop %v663
        %v665 = vsel %vm654, %v664, 0.0
        %v666 = vrot.slane %v665, 4
        %v667 = vadd.f32 %v665, %v666
        %v668 = vrot.slane %v667, 2
        %v669 = vadd.f32 %v667, %v668
        %v670 = vrot.slane %v669, 1
        %v671 = vadd.f32 %v669, %v670
        %v672 = vrcp.pop %v671
        %v673 = vmul.f32 %v664, %v672
        %v674 = vld [vmem:[#allocation3] sm:$0x1f]
        %675 = vmatpush.xpose.msra.mxu0 0.0
        %676 = vmatpush.xpose.msra.mxu0 0.0
        %677 = vmatpush.xpose.msra.mxu0 0.0
        %678 = vmatpush.xpose.msra.mxu0 0.0
        %679 = vmatpush.xpose.msra.mxu0 0.0
        %680 = vmatpush.xpose.msra.mxu0 0.0
        %681 = vmatpush.xpose.msra.mxu0 0.0
        %682 = vmatpush.xpose.msra.mxu0 0.0
        %683 = vmatpush.xpose.msra.mxu0 0.0
        %684 = vmatpush.xpose.msra.mxu0 0.0
        %685 = vmatpush.xpose.msra.mxu0 0.0
        %686 = vmatpush.xpose.msra.mxu0 0.0
        %687 = vmatpush.xpose.msra.mxu0 0.0
        %688 = vmatpush.xpose.msra.mxu0 0.0
        %689 = vmatpush.xpose.msra.mxu0 %v615
        %690 = vmatpush.xpose.msra.mxu0 %v614
        %691 = vmatmul.f32.gmra.mxu0 %v673
        %v692 = vpop.f32.mrf.mxu0
        %v693 = vadd.f32 0.0, %v692
        %694 = vdwg.mxu0
        %v695 = vadd.f32 %v674, %v693
        %vm696 = vcmask 126976
        %697 = vst.msk [vmem:[#allocation3] sm:$0x1f] %vm696, %v695
        %p698 = scmp.eq.s32.totalorder %s34, 1
        // Predicated region
        $region93: #{tpu_custom_call.1} parent=75 // pred_check
          %p699 = pneg %p698
        $region94: #{tpu_custom_call.1} parent=75 // pred_check_branch
          %701 = sbr.rel (%p699) target = $region96
        $region95: #{tpu_custom_call.1} parent=75 // pred_region
          %v702 = vld [vmem:[#allocation3] sm:$0x1f]
          %v703 = vmul.f32 %v702, 0.00390625
          %v704 = vld [vmem:[%s9] sm:$0x1f]
          %vm705 = vcmask 39936
          %v707 = vsel %vm705, %v704, 0
          %v710 = vsel %vm654, %v703, 0
          %712 = vmatpush.msra.mxu0 0.0
          %713 = vmatpush.msra.mxu0 0.0
          %714 = vmatpush.msra.mxu0 0.0
          %715 = vmatpush.msra.mxu0 0.0
          %716 = vmatpush.msra.mxu0 0.0
          %717 = vmatpush.msra.mxu0 0.0
          %718 = vmatpush.msra.mxu0 0.0
          %719 = vmatpush.msra.mxu0 0.0
          %720 = vmatpush.msra.mxu0 0.0
          %721 = vmatpush.msra.mxu0 0.0
          %722 = vmatpush.msra.mxu0 0.0
          %723 = vmatpush.msra.mxu0 0.0
          %724 = vmatpush.msra.mxu0 0.0
          %725 = vmatpush.msra.mxu0 0.0
          %726 = vmatpush.msra.mxu0 0.0
          %727 = vmatpush.msra.mxu0 %v710
          %728 = vmatmul.f32.gmra.mxu0 %v707
          %v729 = vpop.f32.mrf.mxu0
          %v730 = vadd.f32 0.0, %v729
          %731 = vdwg.mxu0
          %v732 = vld [vmem:[%s10] sm:$0x1f]
          %v734 = vsel %vm705, %v732, 0
          %736 = vmatpush.msra.mxu0 0.0
          %737 = vmatpush.msra.mxu0 0.0
          %738 = vmatpush.msra.mxu0 0.0
          %739 = vmatpush.msra.mxu0 0.0
          %740 = vmatpush.msra.mxu0 0.0
          %741 = vmatpush.msra.mxu0 0.0
          %742 = vmatpush.msra.mxu0 0.0
          %743 = vmatpush.msra.mxu0 0.0
          %744 = vmatpush.msra.mxu0 0.0
          %745 = vmatpush.msra.mxu0 0.0
          %746 = vmatpush.msra.mxu0 0.0
          %747 = vmatpush.msra.mxu0 0.0
          %748 = vmatpush.msra.mxu0 0.0
          %749 = vmatpush.msra.mxu0 0.0
          %750 = vmatpush.msra.mxu0 0.0
          %751 = vmatpush.msra.mxu0 %v710
          %752 = vmatmul.f32.gmra.mxu0 %v734
          %v753 = vpop.f32.mrf.mxu0
          %v754 = vadd.f32 0.0, %v753
          %755 = vdwg.mxu0
          %v756 = vld [vmem:[%s11] sm:$0x1f]
          %v758 = vsel %vm705, %v756, 0
          %760 = vmatpush.msra.mxu0 0.0
          %761 = vmatpush.msra.mxu0 0.0
          %762 = vmatpush.msra.mxu0 0.0
          %763 = vmatpush.msra.mxu0 0.0
          %764 = vmatpush.msra.mxu0 0.0
          %765 = vmatpush.msra.mxu0 0.0
          %766 = vmatpush.msra.mxu0 0.0
          %767 = vmatpush.msra.mxu0 0.0
          %768 = vmatpush.msra.mxu0 0.0
          %769 = vmatpush.msra.mxu0 0.0
          %770 = vmatpush.msra.mxu0 0.0
          %771 = vmatpush.msra.mxu0 0.0
          %772 = vmatpush.msra.mxu0 0.0
          %773 = vmatpush.msra.mxu0 0.0
          %774 = vmatpush.msra.mxu0 0.0
          %775 = vmatpush.msra.mxu0 %v710
          %776 = vmatmul.f32.gmra.mxu0 %v758
          %v777 = vpop.f32.mrf.mxu0
          %v778 = vadd.f32 0.0, %v777
          %779 = vdwg.mxu0
          %v780 = vld [vmem:[#allocation6] sm:$0xff]
          %v781 = vld [vmem:[#allocation6 + $0x8] sm:$0xff]
          %v782 = vld [vmem:[#allocation6 + $0x10] sm:$0xff]
          %v783 = vld [vmem:[#allocation6 + $0x18] sm:$0xff]
          %v784 = vld [vmem:[#allocation6 + $0x20] sm:$0xff]
          %v785 = vld [vmem:[#allocation6 + $0x28] sm:$0xff]
          %v786 = vld [vmem:[#allocation6 + $0x30] sm:$0xff]
          %v787 = vld [vmem:[#allocation6 + $0x38] sm:$0xff]
          %v788 = vld [vmem:[#allocation6 + $0x40] sm:$0xff]
          %v789 = vld [vmem:[#allocation6 + $0x48] sm:$0xff]
          %v791 = vrot.slane %v730, 1
          %v792 = vrot.slane %v730, 2
          %v793 = vrot.slane %v730, 3
          %v794 = vrot.slane %v730, 4
          %v795 = vperm.slane %v730, 0
          %v796 = vperm.slane %v791, 0
          %v797 = vperm.slane %v792, 0
          %v798 = vperm.slane %v793, 0
          %v799 = vperm.slane %v794, 0
          %v805 = vmul.f32 %v780, %v795
          %v806 = vmul.f32 %v781, %v795
          %v807 = vmul.f32 %v782, %v796
          %v808 = vmul.f32 %v783, %v796
          %v809 = vmul.f32 %v784, %v797
          %v810 = vmul.f32 %v785, %v797
          %v811 = vmul.f32 %v786, %v798
          %v812 = vmul.f32 %v787, %v798
          %v813 = vmul.f32 %v788, %v799
          %v814 = vmul.f32 %v789, %v799
          %v815 = vsel %vm630, %v805, 0.0
          %816 = vadd.xlane.f32.xlu0 %v815
          %v817 = vpop.xlane.xlu0 %816
          %v818 = vsel %vm630, %v806, 0.0
          %819 = vadd.xlane.f32.xlu0 %v818
          %v820 = vpop.xlane.xlu0 %819
          %v821 = vsel %vm630, %v807, 0.0
          %822 = vadd.xlane.f32.xlu0 %v821
          %v823 = vpop.xlane.xlu0 %822
          %v824 = vsel %vm630, %v808, 0.0
          %825 = vadd.xlane.f32.xlu0 %v824
          %v826 = vpop.xlane.xlu0 %825
          %v827 = vsel %vm630, %v809, 0.0
          %828 = vadd.xlane.f32.xlu0 %v827
          %v829 = vpop.xlane.xlu0 %828
          %v830 = vsel %vm630, %v810, 0.0
          %831 = vadd.xlane.f32.xlu0 %v830
          %v832 = vpop.xlane.xlu0 %831
          %v833 = vsel %vm630, %v811, 0.0
          %834 = vadd.xlane.f32.xlu0 %v833
          %v835 = vpop.xlane.xlu0 %834
          %v836 = vsel %vm630, %v812, 0.0
          %837 = vadd.xlane.f32.xlu0 %v836
          %v838 = vpop.xlane.xlu0 %837
          %v839 = vsel %vm630, %v813, 0.0
          %840 = vadd.xlane.f32.xlu0 %v839
          %v841 = vpop.xlane.xlu0 %840
          %v842 = vsel %vm630, %v814, 0.0
          %843 = vadd.xlane.f32.xlu0 %v842
          %v844 = vpop.xlane.xlu0 %843
          %v845 = vld [vmem:[#allocation8] sm:$0xff]
          %v846 = vld [vmem:[#allocation8 + $0x8] sm:$0xff]
          %v847 = vld [vmem:[#allocation8 + $0x10] sm:$0xff]
          %v848 = vld [vmem:[#allocation8 + $0x18] sm:$0xff]
          %v849 = vld [vmem:[#allocation8 + $0x20] sm:$0xff]
          %v850 = vld [vmem:[#allocation8 + $0x28] sm:$0xff]
          %v851 = vld [vmem:[#allocation8 + $0x30] sm:$0xff]
          %v852 = vld [vmem:[#allocation8 + $0x38] sm:$0xff]
          %v853 = vld [vmem:[#allocation8 + $0x40] sm:$0xff]
          %v854 = vld [vmem:[#allocation8 + $0x48] sm:$0xff]
          %v856 = vrot.slane %v754, 1
          %v857 = vrot.slane %v754, 2
          %v858 = vrot.slane %v754, 3
          %v859 = vrot.slane %v754, 4
          %v860 = vperm.slane %v754, 0
          %v861 = vperm.slane %v856, 0
          %v862 = vperm.slane %v857, 0
          %v863 = vperm.slane %v858, 0
          %v864 = vperm.slane %v859, 0
          %v870 = vmul.f32 %v845, %v860
          %v871 = vmul.f32 %v846, %v860
          %v872 = vmul.f32 %v847, %v861
          %v873 = vmul.f32 %v848, %v861
          %v874 = vmul.f32 %v849, %v862
          %v875 = vmul.f32 %v850, %v862
          %v876 = vmul.f32 %v851, %v863
          %v877 = vmul.f32 %v852, %v863
          %v878 = vmul.f32 %v853, %v864
          %v879 = vmul.f32 %v854, %v864
          %v880 = vsel %vm630, %v870, 0.0
          %881 = vadd.xlane.f32.xlu0 %v880
          %v882 = vpop.xlane.xlu0 %881
          %v883 = vsel %vm630, %v871, 0.0
          %884 = vadd.xlane.f32.xlu0 %v883
          %v885 = vpop.xlane.xlu0 %884
          %v886 = vsel %vm630, %v872, 0.0
          %887 = vadd.xlane.f32.xlu0 %v886
          %v888 = vpop.xlane.xlu0 %887
          %v889 = vsel %vm630, %v873, 0.0
          %890 = vadd.xlane.f32.xlu0 %v889
          %v891 = vpop.xlane.xlu0 %890
          %v892 = vsel %vm630, %v874, 0.0
          %893 = vadd.xlane.f32.xlu0 %v892
          %v894 = vpop.xlane.xlu0 %893
          %v895 = vsel %vm630, %v875, 0.0
          %896 = vadd.xlane.f32.xlu0 %v895
          %v897 = vpop.xlane.xlu0 %896
          %v898 = vsel %vm630, %v876, 0.0
          %899 = vadd.xlane.f32.xlu0 %v898
          %v900 = vpop.xlane.xlu0 %899
          %v901 = vsel %vm630, %v877, 0.0
          %902 = vadd.xlane.f32.xlu0 %v901
          %v903 = vpop.xlane.xlu0 %902
          %v904 = vsel %vm630, %v878, 0.0
          %905 = vadd.xlane.f32.xlu0 %v904
          %v906 = vpop.xlane.xlu0 %905
          %v907 = vsel %vm630, %v879, 0.0
          %908 = vadd.xlane.f32.xlu0 %v907
          %v909 = vpop.xlane.xlu0 %908
          %v910 = vadd.f32 %v817, %v882
          %v911 = vadd.f32 %v820, %v885
          %v912 = vadd.f32 %v823, %v888
          %v913 = vadd.f32 %v826, %v891
          %v914 = vadd.f32 %v829, %v894
          %v915 = vadd.f32 %v832, %v897
          %v916 = vadd.f32 %v835, %v900
          %v917 = vadd.f32 %v838, %v903
          %v918 = vadd.f32 %v841, %v906
          %v919 = vadd.f32 %v844, %v909
          %v920 = vld [vmem:[%s8] sm:$0x1f]
          %v922 = vperm.slane %v920, 0
          %v923 = vlaneseq
          %v924 = vshrl.u32 %v923, 7
          %926 = vset.pattern.permute.xlu0 %v924
          %927 = vperm.xlu0 %926, %v922
          %v928 = vpop.permute.xlu0 %927
          %v929 = vlaneseq
          %v930 = vshrl.u32 %v929, 7
          %v931 = vadd.s32 %v930, 8
          %932 = vset.pattern.permute.xlu0 %v931
          %933 = vperm.xlu0 %932, %v922
          %v934 = vpop.permute.xlu0 %933
          %v935 = vperm.slane %v920, 1
          %v936 = vlaneseq
          %v937 = vshrl.u32 %v936, 7
          %939 = vset.pattern.permute.xlu0 %v937
          %940 = vperm.xlu0 %939, %v935
          %v941 = vpop.permute.xlu0 %940
          %v942 = vlaneseq
          %v943 = vshrl.u32 %v942, 7
          %v944 = vadd.s32 %v943, 8
          %945 = vset.pattern.permute.xlu0 %v944
          %946 = vperm.xlu0 %945, %v935
          %v947 = vpop.permute.xlu0 %946
          %v948 = vperm.slane %v920, 2
          %v949 = vlaneseq
          %v950 = vshrl.u32 %v949, 7
          %952 = vset.pattern.permute.xlu0 %v950
          %953 = vperm.xlu0 %952, %v948
          %v954 = vpop.permute.xlu0 %953
          %v955 = vlaneseq
          %v956 = vshrl.u32 %v955, 7
          %v957 = vadd.s32 %v956, 8
          %958 = vset.pattern.permute.xlu0 %v957
          %959 = vperm.xlu0 %958, %v948
          %v960 = vpop.permute.xlu0 %959
          %v961 = vperm.slane %v920, 3
          %v962 = vlaneseq
          %v963 = vshrl.u32 %v962, 7
          %965 = vset.pattern.permute.xlu0 %v963
          %966 = vperm.xlu0 %965, %v961
          %v967 = vpop.permute.xlu0 %966
          %v968 = vlaneseq
          %v969 = vshrl.u32 %v968, 7
          %v970 = vadd.s32 %v969, 8
          %971 = vset.pattern.permute.xlu0 %v970
          %972 = vperm.xlu0 %971, %v961
          %v973 = vpop.permute.xlu0 %972
          %v974 = vperm.slane %v920, 4
          %v975 = vlaneseq
          %v976 = vshrl.u32 %v975, 7
          %978 = vset.pattern.permute.xlu0 %v976
          %979 = vperm.xlu0 %978, %v974
          %v980 = vpop.permute.xlu0 %979
          %v981 = vlaneseq
          %v982 = vshrl.u32 %v981, 7
          %v983 = vadd.s32 %v982, 8
          %984 = vset.pattern.permute.xlu0 %v983
          %985 = vperm.xlu0 %984, %v974
          %v986 = vpop.permute.xlu0 %985
          %v997 = vadd.f32 %v910, %v928
          %v998 = vadd.f32 %v911, %v934
          %v999 = vadd.f32 %v912, %v941
          %v1000 = vadd.f32 %v913, %v947
          %v1001 = vadd.f32 %v914, %v954
          %v1002 = vadd.f32 %v915, %v960
          %v1003 = vadd.f32 %v916, %v967
          %v1004 = vadd.f32 %v917, %v973
          %v1005 = vadd.f32 %v918, %v980
          %v1006 = vadd.f32 %v919, %v986
          %v1007 = vld [vmem:[%s12] sm:$0x1f]
          %v1008 = vmul.f32 %v1007, %v778
          %v1009 = vsel %vm696, %v1008, 0.0
          %1010 = vadd.xlane.f32.xlu0 %v1009
          %v1011 = vpop.xlane.xlu0 %1010
          %v1012 = vld [vmem:[%s13] sm:$0x1f]
          %v1013 = vadd.f32 %v1011, %v1012
          %v1014 = vld [vmem:[#allocation2] sm:$0xff]
          %v1015 = vld [vmem:[#allocation2 + $0x8] sm:$0xff]
          %v1016 = vld [vmem:[#allocation2 + $0x10] sm:$0xff]
          %v1017 = vld [vmem:[#allocation2 + $0x18] sm:$0xff]
          %1019 = vset.pattern.permute.xlu0 0
          %1020 = vperm.xlu0 %1019, %v1013
          %v1021 = vpop.permute.xlu0 %1020
          %1033 = vset.pattern.permute.xlu0 0
          %1034 = vperm.xlu0 %1033, %v997
          %v1035 = vpop.permute.xlu0 %1034
          %1036 = vset.pattern.permute.xlu0 0
          %1037 = vperm.xlu0 %1036, %v998
          %v1038 = vpop.permute.xlu0 %1037
          %1039 = vset.pattern.permute.xlu0 0
          %1040 = vperm.xlu0 %1039, %v999
          %v1041 = vpop.permute.xlu0 %1040
          %1042 = vset.pattern.permute.xlu0 0
          %1043 = vperm.xlu0 %1042, %v1000
          %v1044 = vpop.permute.xlu0 %1043
          %1045 = vset.pattern.permute.xlu0 0
          %1046 = vperm.xlu0 %1045, %v1001
          %v1047 = vpop.permute.xlu0 %1046
          %1048 = vset.pattern.permute.xlu0 0
          %1049 = vperm.xlu0 %1048, %v1002
          %v1050 = vpop.permute.xlu0 %1049
          %1051 = vset.pattern.permute.xlu0 0
          %1052 = vperm.xlu0 %1051, %v1003
          %v1053 = vpop.permute.xlu0 %1052
          %1054 = vset.pattern.permute.xlu0 0
          %1055 = vperm.xlu0 %1054, %v1004
          %v1056 = vpop.permute.xlu0 %1055
          %1057 = vset.pattern.permute.xlu0 0
          %1058 = vperm.xlu0 %1057, %v1005
          %v1059 = vpop.permute.xlu0 %1058
          %1060 = vset.pattern.permute.xlu0 0
          %1061 = vperm.xlu0 %1060, %v1006
          %v1062 = vpop.permute.xlu0 %1061
          %v1063 = vlaneseq
          %v1064 = vand.u32 %v1063, 127
          %v1065 = vperm.slane %v1035, %v1064
          %v1066 = vadd.s32 %v1064, 4294967288
          %v1067 = vperm.slane %v1038, %v1066
          %vm1068 = vcmask 130112
          %v1069 = vsel %vm1068, %v1067, %v1065
          %v1070 = vperm.slane %v1041, %v1064
          %v1071 = vperm.slane %v1044, %v1066
          %v1072 = vsel %vm1068, %v1071, %v1070
          %v1073 = vperm.slane %v1047, %v1064
          %v1074 = vperm.slane %v1050, %v1066
          %v1075 = vsel %vm1068, %v1074, %v1073
          %v1076 = vperm.slane %v1053, %v1064
          %v1077 = vperm.slane %v1056, %v1066
          %v1078 = vsel %vm1068, %v1077, %v1076
          %v1079 = vperm.slane %v1059, %v1064
          %v1080 = vperm.slane %v1062, %v1066
          %v1081 = vsel %vm1068, %v1080, %v1079
          %vm1082 = vcmask 1041409
          %v1083 = vsel %vm1082, %v1072, %v1069
          %vm1084 = vcmask 1042434
          %v1085 = vsel %vm1084, %v1075, %v1083
          %vm1086 = vcmask 1043459
          %v1087 = vsel %vm1086, %v1078, %v1085
          %vm1088 = vcmask 1044484
          %v1089 = vsel %vm1088, %v1081, %v1087
          %v1090 = vsel %vm630, %v1089, 0
          %1092 = vmatpush.msra.mxu0 0.0
          %1093 = vmatpush.msra.mxu0 0.0
          %1094 = vmatpush.msra.mxu0 0.0
          %1095 = vmatpush.msra.mxu0 0.0
          %1096 = vmatpush.msra.mxu0 0.0
          %1097 = vmatpush.msra.mxu0 0.0
          %1098 = vmatpush.msra.mxu0 0.0
          %1099 = vmatpush.msra.mxu0 0.0
          %1100 = vmatpush.msra.mxu0 0.0
          %1101 = vmatpush.msra.mxu0 0.0
          %1102 = vmatpush.msra.mxu0 0.0
          %1103 = vmatpush.msra.mxu0 0.0
          %1104 = vmatpush.msra.mxu0 0.0
          %1105 = vmatpush.msra.mxu0 0.0
          %1106 = vmatpush.msra.mxu0 %v1016
          %1107 = vmatpush.msra.mxu0 %v1014
          %1108 = vmatmul.f32.gmra.mxu0 %v1090
          %v1109 = vpop.f32.mrf.mxu0
          %v1110 = vadd.f32 %v1021, %v1109
          %1111 = vdwg.mxu0
          %1112 = vmatpush.msra.mxu0 0.0
          %1113 = vmatpush.msra.mxu0 0.0
          %1114 = vmatpush.msra.mxu0 0.0
          %1115 = vmatpush.msra.mxu0 0.0
          %1116 = vmatpush.msra.mxu0 0.0
          %1117 = vmatpush.msra.mxu0 0.0
          %1118 = vmatpush.msra.mxu0 0.0
          %1119 = vmatpush.msra.mxu0 0.0
          %1120 = vmatpush.msra.mxu0 0.0
          %1121 = vmatpush.msra.mxu0 0.0
          %1122 = vmatpush.msra.mxu0 0.0
          %1123 = vmatpush.msra.mxu0 0.0
          %1124 = vmatpush.msra.mxu0 0.0
          %1125 = vmatpush.msra.mxu0 0.0
          %1126 = vmatpush.msra.mxu0 %v1017
          %1127 = vmatpush.msra.mxu0 %v1015
          %1128 = vmatmul.f32.gmra.mxu0 %v1090
          %v1129 = vpop.f32.mrf.mxu0
          %v1130 = vadd.f32 %v1021, %v1129
          %1131 = vdwg.mxu0
          %1132 = vst [vmem:[%s537] sm:$0x1f] %v1110
          %1133 = vst [vmem:[%s537 + $0x8] sm:$0x1f] %v1130
        $region96: #{tpu_custom_call.1} parent=75 // pred_fallthru
          _
        %p1134 = scmp.lt.s32.totalorder %s33, 1
        %s1135 = scalar_select %p1134, %s33, 1
        %s1136 = smul.addr %s1135, 2
        %s1137 = smul.addr %s1136, 8
        %s1138 = scalar_lea.vmem %s14, %s1137
        // Predicated region
        $region97: #{tpu_custom_call.1} parent=75 // pred_check
          %p1139 = pneg %p360
        $region98: #{tpu_custom_call.1} parent=75 // pred_check_branch
          %1141 = sbr.rel (%p1139) target = $region100
        $region99: #{tpu_custom_call.1} parent=75 // pred_region
          _
        $region100: #{tpu_custom_call.1} parent=75 // pred_fallthru
          _
      $region76: #{tpu_custom_call.1} parent=5 // pred_fallthru
        _
      %p1142 = scmp.le.s32.totalorder 2, %s24
      // Predicated region
      $region101: #{tpu_custom_call.1} parent=5 // pred_check
        %p1143 = pneg %p1142
      $region102: #{tpu_custom_call.1} parent=5 // pred_check_branch
        %1145 = sbr.rel (%p1143) target = $region104
      $region103: #{tpu_custom_call.1} parent=5 // pred_region
        %s1146 = ssub.s32 %s24, 2
        // Predicated region
        $region105: #{tpu_custom_call.1} parent=103 // pred_check
          %p1147 = pneg %p366
        $region106: #{tpu_custom_call.1} parent=103 // pred_check_branch
          %1149 = sbr.rel (%p1147) target = $region108
        $region107: #{tpu_custom_call.1} parent=103 // pred_region
          %p1150 = scmp.lt.s32.totalorder %s35, 1
          %s1151 = scalar_select %p1150, %s35, 1
          %s1152 = smul.addr %s1151, 2
          %s1153 = smul.addr %s1152, 8
          %s1154 = scalar_lea.vmem %s14, %s1153
        $region108: #{tpu_custom_call.1} parent=103 // pred_fallthru
          _
      $region104: #{tpu_custom_call.1} parent=5 // pred_fallthru
        _
    $region6: #{tpu_custom_call.1} parent=1 // loop_footer
      %s28 = sadd.s32 1, %s24
    $region7: #{tpu_custom_call.1} parent=1 // loop_footer_branch
      %23 = sbr.rel target = $region3
    $region8: #{tpu_custom_call.1} parent=1 // loop_exit
      _
    %1155 = vsyncpa [#allocation5], 1
    %s1156 = scalar_lea.sflag [#allocation5], 1
    %1157 = vsyncpa %s1156, 1
    %1158 = vsyncpa [#allocation7], 1

</llo_original>
